<compile_context>
chip_gen: v7x
topology: tpu7x:2x2x1
jax: 0.10.0
libtpu: 0.0.40
codegen_flags: <defaults>
</compile_context>

<pallas_src>
import functools

import jax
import jax.numpy as jnp
from jax.experimental import pallas as pl
from jax.experimental.pallas import tpu as pltpu


def _round_up(a, m):
    return ((a + m - 1) // m) * m


def _resblock_kernel(xb_ref, w1_ref, b1_ref, w2_ref, b2_ref, o_ref, mid_ref,
                     *, TH, W, PW, C, RC, H, res_scale):
    """One (batch, row-band) grid step.

    xb_ref : (1, TH+4, PW, C)  input band: 2-row halo each side, 1 zero col
                               left, >=1 zero col right (x dtype).
    w*_ref : (9C, C)           bf16 weight slabs, row = (kh*3 + kw)*C + cin.
    b*_ref : (1, 1, C)         f32 biases.
    o_ref  : (1, TH, W, C)     output band.
    mid_ref: (TH+2, PW, C)     bf16 scratch: relu(conv1) incl. 1-row halo.
                               (mid row m <-> original image row r*TH + m - 1)
    """
    r = pl.program_id(1)
    rows1 = TH + 2
    n_chunks = TH // RC

    w1 = w1_ref[...]
    w2 = w2_ref[...]
    b1 = b1_ref[...]
    b2 = b2_ref[...]
    zero_col = jnp.zeros((rows1, 1, C), jnp.bfloat16)
    zero_row = jnp.zeros((1, PW, C), jnp.bfloat16)

    # ---- conv1 + ReLU -> mid rows [s, s+nrows)  (needs xb rows [s, s+nrows+2)) ----
    def conv1_rows(s, nrows):
        # Cast the chunk to bf16 exactly once; build the K = 9C im2col patch.
        xc = xb_ref[0, pl.ds(s, nrows + 2), :, :].astype(jnp.bfloat16)
        patch = jnp.concatenate(
            [xc[dh:dh + nrows, dw:dw + W, :]
             for dh in range(3) for dw in range(3)], axis=-1)     # (nrows, W, 9C)
        acc = jax.lax.dot_general(
            patch, w1, dimension_numbers=(((2,), (0,)), ((), ())),
            preferred_element_type=jnp.float32)
        mid_ref[pl.ds(s, nrows), 1:W + 1, :] = (
            jnp.maximum(acc + b1, 0.0).astype(jnp.bfloat16))

    def _c1_body(i, carry):
        conv1_rows(pl.multiple_of(i * RC, RC), RC)
        return carry

    jax.lax.fori_loop(0, n_chunks, _c1_body, 0)
    conv1_rows(TH, 2)          # the two halo rows of mid (rows TH and TH+1)

    # conv2's zero padding: the two pad columns, plus the rows at the true
    # image boundary (original rows -1 and H) when they fall inside this band.
    mid_ref[:, 0:1, :] = zero_col
    mid_ref[:, W + 1:W + 2, :] = zero_col

    @pl.when(r == 0)
    def _zero_top():
        mid_ref[0:1, :, :] = zero_row

    bot = H - r * TH + 1       # band-local mid row holding original row H
    @pl.when(jnp.logical_and(bot >= 0, bot <= TH + 1))
    def _zero_bottom():
        mid_ref[pl.ds(jnp.clip(bot, 0, TH + 1), 1), :, :] = zero_row

    # ---- conv2 + residual add, RC output rows per chunk ----
    def _c2_body(i, carry):
        s = pl.multiple_of(i * RC, RC)
        mc = mid_ref[pl.ds(s, RC + 2), :, :]                      # (RC+2, PW, C)
        patch = jnp.concatenate(
            [mc[dh:dh + RC, dw:dw + W, :]
             for dh in range(3) for dw in range(3)], axis=-1)     # (RC, W, 9C)
        acc = jax.lax.dot_general(
            patch, w2, dimension_numbers=(((2,), (0,)), ((), ())),
            preferred_element_type=jnp.float32) + b2
        ident = xb_ref[0, pl.ds(s + 2, RC), 1:W + 1, :].astype(jnp.float32)
        o_ref[0, pl.ds(s, RC), :, :] = (ident + acc * res_scale).astype(o_ref.dtype)
        return carry

    jax.lax.fori_loop(0, n_chunks, _c2_body, 0)


def _choose_tiles(H, W, C, x_itemsize, row_band):
    """Pick (TH, RC, PW, vmem_limit) from the chip generation's VMEM size."""
    RC = 8                                    # inner row chunk (sublane aligned)
    PW = _round_up(W + 2, 16)                 # bf16 sublane packing is 16
    try:
        cap = int(pltpu.get_tpu_info().vmem_capacity_bytes)
    except Exception:
        cap = 64 * 1024 * 1024                # conservative default (v7x-sized)
    vmem_limit = max(32 * 1024 * 1024, min(int(cap * 0.8), 128 * 1024 * 1024))

    # Per-band-row cost: double-buffered input + double-buffered output + mid.
    per_row = PW * C * (2 * x_itemsize + 2) + W * C * 2 * x_itemsize
    fixed = (2 * 2 * 9 * C * C * 2                      # weight slabs
             + 2 * RC * W * 9 * C * 2                   # im2col patches (slack)
             + (RC + 2) * PW * C * (x_itemsize + 2)     # chunk load + bf16 cast
             + 2 * RC * W * C * 4                       # f32 accumulators
             + (4 << 20))                               # headroom
    budget = int(cap * 0.6)
    th_cap = max(RC, ((budget - fixed) // max(per_row, 1)) // RC * RC)
    TH = min(_round_up(max(row_band, RC), RC), _round_up(H, RC), th_cap)
    TH = max(RC, (TH // RC) * RC)
    return TH, RC, PW, vmem_limit


def residual_block_no_bn(x_nchw, w1, b1, w2, b2, res_scale=1.0, row_band=64):
    """x_nchw: (B, C, H, W); w1/w2: (C, C, 3, 3) torch OIHW; b1/b2: (C,)."""
    B, C, H, W = x_nchw.shape
    x_itemsize = jnp.dtype(x_nchw.dtype).itemsize
    TH, RC, PW, vmem_limit = _choose_tiles(H, W, C, x_itemsize, row_band)
    Hp = _round_up(H, TH)                     # pad H instead of shrinking TH
    nbH = Hp // TH
    # NOTE: on v7x (2 TensorCores) keep B * nbH even for full occupancy.

    # NCHW -> NHWC; pad: 2 halo/pad rows top, (Hp-H)+2 bottom, 1 zero col left,
    # PW-W-1 zero cols right (conv pad + alignment filler, never read by taps).
    x_nhwc = jnp.transpose(x_nchw, (0, 2, 3, 1))
    x_pad = jnp.pad(x_nhwc, ((0, 0), (2, (Hp - H) + 2), (1, PW - W - 1), (0, 0)))

    # Overlapping row bands (2-row halo each side), flattened to (B*nbH, ...).
    # TODO(synk): replace with memory_space=pl.ANY + manual double-buffered
    # make_async_copy windows to remove the wrapper-side halo duplication.
    x_bands = jnp.stack(
        [x_pad[:, r * TH:r * TH + TH + 4] for r in range(nbH)], axis=1)
    x_bands = x_bands.reshape(B * nbH, TH + 4, PW, C)

    # torch OIHW -> HWIO -> (9C, C) slab with row = (kh*3 + kw)*C + cin; bf16.
    w1s = jnp.transpose(w1, (2, 3, 1, 0)).reshape(9 * C, C).astype(jnp.bfloat16)
    w2s = jnp.transpose(w2, (2, 3, 1, 0)).reshape(9 * C, C).astype(jnp.bfloat16)
    b1r = b1.reshape(1, 1, C).astype(jnp.float32)
    b2r = b2.reshape(1, 1, C).astype(jnp.float32)

    kernel = functools.partial(_resblock_kernel, TH=TH, W=W, PW=PW, C=C, RC=RC,
                               H=H, res_scale=float(res_scale))

    cost = pl.CostEstimate(
        flops=2 * 2 * 9 * C * C * B * Hp * W,
        transcendentals=0,
        bytes_accessed=(x_bands.size * x_itemsize + B * Hp * W * C * x_itemsize
                        + (w1s.size + w2s.size) * 2
                        + (b1r.size + b2r.size) * 4))

    out_nhwc = pl.pallas_call(
        kernel,
        out_shape=jax.ShapeDtypeStruct((B, Hp, W, C), x_nchw.dtype),
        grid_spec=pltpu.PrefetchScalarGridSpec(
            num_scalar_prefetch=0,
            grid=(B, nbH),
            in_specs=[
                pl.BlockSpec((1, TH + 4, PW, C),
                             lambda b, r: (b * nbH + r, 0, 0, 0)),
                pl.BlockSpec((9 * C, C), lambda b, r: (0, 0)),
                pl.BlockSpec((1, 1, C), lambda b, r: (0, 0, 0)),
                pl.BlockSpec((9 * C, C), lambda b, r: (0, 0)),
                pl.BlockSpec((1, 1, C), lambda b, r: (0, 0, 0)),
            ],
            out_specs=pl.BlockSpec((1, TH, W, C), lambda b, r: (b, r, 0, 0)),
            scratch_shapes=[pltpu.VMEM((TH + 2, PW, C), jnp.bfloat16)],
        ),
        compiler_params=pltpu.CompilerParams(
            dimension_semantics=("parallel", "parallel"),
            vmem_limit_bytes=vmem_limit),
        cost_estimate=cost,
    )(x_bands, w1s, b1r, w2s, b2r)

    # Crop padded rows, NHWC -> NCHW.
    return jnp.transpose(out_nhwc[:, :H], (0, 3, 1, 2))


def _init_conv_params(key, num_feat, scale=0.1):
    """default_init_weights: kaiming_normal_ (fan_in, gain=sqrt(2)) * scale."""
    fan_in = num_feat * 3 * 3
    std = (2.0 ** 0.5) / (fan_in ** 0.5)
    w = jax.random.normal(key, (num_feat, num_feat, 3, 3), jnp.float32) * std * scale
    b = jnp.zeros((num_feat,), jnp.float32)
    return w, b


def _reference(x, w1, b1, w2, b2, res_scale):
    """Pure-JAX reference (NCHW conv) for correctness check."""
    dn = jax.lax.conv_dimension_numbers(x.shape, w1.shape, ('NCHW', 'OIHW', 'NCHW'))
    h = jax.lax.conv_general_dilated(x, w1, (1, 1), ((1, 1), (1, 1)),
                                     dimension_numbers=dn) + b1[None, :, None, None]
    h = jnp.maximum(h, 0.0)
    h = jax.lax.conv_general_dilated(h, w2, (1, 1), ((1, 1), (1, 1)),
                                     dimension_numbers=dn) + b2[None, :, None, None]
    return x + h * res_scale


if __name__ == "__main__":
    key = jax.random.PRNGKey(0)
    k_x, k_w1, k_w2, k_b1, k_b2, k_x2 = jax.random.split(key, 6)

    B, C, H, W = 2, 4, 16, 16
    res_scale = 1.0

    x = jax.random.normal(k_x, (B, C, H, W), jnp.float32)
    w1, _ = _init_conv_params(k_w1, C, scale=0.1)
    w2, _ = _init_conv_params(k_w2, C, scale=0.1)
    # default_init_weights zero-fills biases; small nonzero biases exercise the
    # bias path (forward semantics unchanged).
    b1 = 0.05 * jax.random.normal(k_b1, (C,), jnp.float32)
    b2 = 0.05 * jax.random.normal(k_b2, (C,), jnp.float32)

    out = residual_block_no_bn(x, w1, b1, w2, b2, res_scale, row_band=8)
    out = jax.block_until_ready(out)
    ref = _reference(x, w1, b1, w2, b2, res_scale)
    assert out.shape == (B, C, H, W)
    # bf16 MXU operands (f32 accumulation) -> loosened tolerance vs f32 ref.
    assert jnp.allclose(out, ref, atol=2e-2, rtol=2e-2), "mismatch vs reference"

    # Ragged spatial shape: exercises the padded-H path (H not a multiple of
    # the row band) and the dynamic image-boundary zeroing.
    H2, W2 = 11, 12
    x2 = jax.random.normal(k_x2, (B, C, H2, W2), jnp.float32)
    out2 = jax.block_until_ready(
        residual_block_no_bn(x2, w1, b1, w2, b2, 0.7, row_band=8))
    ref2 = _reference(x2, w1, b1, w2, b2, 0.7)
    assert out2.shape == (B, C, H2, W2)
    assert jnp.allclose(out2, ref2, atol=2e-2, rtol=2e-2), "mismatch (ragged)"

    print("KERNEL_OK")
</pallas_src>

<mosaic_0001>
module attributes {stable_mosaic.version = 11 : i64} {
  func.func @_resblock_kernel(%arg0: i32, %arg1: i32, %arg2: memref<1x12x32x4xf32, #tpu.memory_space<vmem>>, %arg3: memref<36x4xbf16, #tpu.memory_space<vmem>>, %arg4: memref<1x1x4xf32, #tpu.memory_space<vmem>>, %arg5: memref<36x4xbf16, #tpu.memory_space<vmem>>, %arg6: memref<1x1x4xf32, #tpu.memory_space<vmem>>, %arg7: memref<1x8x16x4xf32, #tpu.memory_space<vmem>>, %arg8: memref<10x32x4xbf16, #tpu.memory_space<vmem>>) attributes {dimension_semantics = [#tpu.dimension_semantics<parallel>, #tpu.dimension_semantics<parallel>], iteration_bounds = array<i64: 2, 2>, scalar_prefetch = 0 : i64, scratch_operands = 1 : i64, tpu.core_type = #tpu.core_type<tc>, window_params = [{transform_indices = @transform_0, window_bounds = array<i64: 1, 12, 32, 4>}, {pipeline_mode = #tpu.pipeline_mode<synchronous>, transform_indices = @transform_1, window_bounds = array<i64: 36, 4>}, {pipeline_mode = #tpu.pipeline_mode<synchronous>, transform_indices = @transform_2, window_bounds = array<i64: 1, 1, 4>}, {pipeline_mode = #tpu.pipeline_mode<synchronous>, transform_indices = @transform_3, window_bounds = array<i64: 36, 4>}, {pipeline_mode = #tpu.pipeline_mode<synchronous>, transform_indices = @transform_4, window_bounds = array<i64: 1, 1, 4>}, {transform_indices = @transform_5, window_bounds = array<i64: 1, 8, 16, 4>}]} {
    %c0 = arith.constant 0 : index
    %c0_0 = arith.constant 0 : index
    %0 = vector.load %arg3[%c0, %c0_0] : memref<36x4xbf16, #tpu.memory_space<vmem>>, vector<36x4xbf16>
    %c0_1 = arith.constant 0 : index
    %c0_2 = arith.constant 0 : index
    %1 = vector.load %arg5[%c0_1, %c0_2] : memref<36x4xbf16, #tpu.memory_space<vmem>>, vector<36x4xbf16>
    %c0_3 = arith.constant 0 : index
    %c0_4 = arith.constant 0 : index
    %c0_5 = arith.constant 0 : index
    %2 = vector.load %arg4[%c0_3, %c0_4, %c0_5] : memref<1x1x4xf32, #tpu.memory_space<vmem>>, vector<1x1x4xf32>
    %c0_6 = arith.constant 0 : index
    %c0_7 = arith.constant 0 : index
    %c0_8 = arith.constant 0 : index
    %3 = vector.load %arg6[%c0_6, %c0_7, %c0_8] : memref<1x1x4xf32, #tpu.memory_space<vmem>>, vector<1x1x4xf32>
    %cst = arith.constant 0.000000e+00 : bf16
    %4 = vector.broadcast %cst : bf16 to vector<10x1x4xbf16>
    %cst_9 = arith.constant 0.000000e+00 : bf16
    %5 = vector.broadcast %cst_9 : bf16 to vector<1x32x4xbf16>
    %c0_i32 = arith.constant 0 : i32
    %c8_i32 = arith.constant 8 : i32
    %6 = arith.muli %c0_i32, %c8_i32 : i32
    %7 = tpu.assume_multiple %6, 8 : i32
    %c0_10 = arith.constant 0 : index
    %8 = arith.index_cast %7 : i32 to index
    %c0_11 = arith.constant 0 : index
    %c0_12 = arith.constant 0 : index
    %9 = vector.load %arg2[%c0_10, %8, %c0_11, %c0_12] : memref<1x12x32x4xf32, #tpu.memory_space<vmem>>, vector<1x10x32x4xf32>
    %10 = vector.shape_cast %9 : vector<1x10x32x4xf32> to vector<10x32x4xf32>
    %11 = arith.truncf %10 : vector<10x32x4xf32> to vector<10x32x4xbf16>
    %12 = vector.extract_strided_slice %11 {offsets = [0, 0, 0], sizes = [8, 16, 4], strides = [1, 1, 1]} : vector<10x32x4xbf16> to vector<8x16x4xbf16>
    %13 = vector.extract_strided_slice %11 {offsets = [0, 1, 0], sizes = [8, 16, 4], strides = [1, 1, 1]} : vector<10x32x4xbf16> to vector<8x16x4xbf16>
    %14 = vector.extract_strided_slice %11 {offsets = [0, 2, 0], sizes = [8, 16, 4], strides = [1, 1, 1]} : vector<10x32x4xbf16> to vector<8x16x4xbf16>
    %15 = vector.extract_strided_slice %11 {offsets = [1, 0, 0], sizes = [8, 16, 4], strides = [1, 1, 1]} : vector<10x32x4xbf16> to vector<8x16x4xbf16>
    %16 = vector.extract_strided_slice %11 {offsets = [1, 1, 0], sizes = [8, 16, 4], strides = [1, 1, 1]} : vector<10x32x4xbf16> to vector<8x16x4xbf16>
    %17 = vector.extract_strided_slice %11 {offsets = [1, 2, 0], sizes = [8, 16, 4], strides = [1, 1, 1]} : vector<10x32x4xbf16> to vector<8x16x4xbf16>
    %18 = vector.extract_strided_slice %11 {offsets = [2, 0, 0], sizes = [8, 16, 4], strides = [1, 1, 1]} : vector<10x32x4xbf16> to vector<8x16x4xbf16>
    %19 = vector.extract_strided_slice %11 {offsets = [2, 1, 0], sizes = [8, 16, 4], strides = [1, 1, 1]} : vector<10x32x4xbf16> to vector<8x16x4xbf16>
    %20 = vector.extract_strided_slice %11 {offsets = [2, 2, 0], sizes = [8, 16, 4], strides = [1, 1, 1]} : vector<10x32x4xbf16> to vector<8x16x4xbf16>
    %21 = tpu.concatenate %12, %13, %14, %15, %16, %17, %18, %19, %20 in 2 : vector<8x16x4xbf16>, vector<8x16x4xbf16>, vector<8x16x4xbf16>, vector<8x16x4xbf16>, vector<8x16x4xbf16>, vector<8x16x4xbf16>, vector<8x16x4xbf16>, vector<8x16x4xbf16>, vector<8x16x4xbf16> -> vector<8x16x36xbf16>
    %cst_13 = arith.constant dense<0.000000e+00> : vector<8x16x4xf32>
    %22 = tpu.matmul %21, %0, %cst_13 {dimension_numbers = #tpu.dot_dimension_numbers<[2], [0], [0, 1], [1], [0, 0, 0, 1, 1, 1], [], []>} : vector<8x16x36xbf16>, vector<36x4xbf16>, vector<8x16x4xf32> -> vector<8x16x4xf32>
    %23 = vector.broadcast %2 : vector<1x1x4xf32> to vector<8x16x4xf32>
    %24 = arith.addf %22, %23 : vector<8x16x4xf32>
    %cst_14 = arith.constant 0.000000e+00 : f32
    %25 = vector.broadcast %cst_14 : f32 to vector<8x16x4xf32>
    %26 = arith.maximumf %24, %25 : vector<8x16x4xf32>
    %27 = arith.truncf %26 : vector<8x16x4xf32> to vector<8x16x4xbf16>
    %28 = arith.index_cast %7 : i32 to index
    %c1 = arith.constant 1 : index
    %c0_15 = arith.constant 0 : index
    %29 = vector.load %arg8[%28, %c1, %c0_15] : memref<10x32x4xbf16, #tpu.memory_space<vmem>>, vector<8x16x4xbf16>
    tpu.vector_store %arg8[%28, %c1, %c0_15], %27 {strides = array<i32>} : memref<10x32x4xbf16, #tpu.memory_space<vmem>>, vector<8x16x4xbf16>,
    %c1_i32 = arith.constant 1 : i32
    %c0_16 = arith.constant 0 : index
    %c8 = arith.constant 8 : index
    %c0_17 = arith.constant 0 : index
    %c0_18 = arith.constant 0 : index
    %30 = vector.load %arg2[%c0_16, %c8, %c0_17, %c0_18] : memref<1x12x32x4xf32, #tpu.memory_space<vmem>>, vector<1x4x32x4xf32>
    %31 = vector.shape_cast %30 : vector<1x4x32x4xf32> to vector<4x32x4xf32>
    %32 = arith.truncf %31 : vector<4x32x4xf32> to vector<4x32x4xbf16>
    %33 = vector.extract_strided_slice %32 {offsets = [0, 0, 0], sizes = [2, 16, 4], strides = [1, 1, 1]} : vector<4x32x4xbf16> to vector<2x16x4xbf16>
    %34 = vector.extract_strided_slice %32 {offsets = [0, 1, 0], sizes = [2, 16, 4], strides = [1, 1, 1]} : vector<4x32x4xbf16> to vector<2x16x4xbf16>
    %35 = vector.extract_strided_slice %32 {offsets = [0, 2, 0], sizes = [2, 16, 4], strides = [1, 1, 1]} : vector<4x32x4xbf16> to vector<2x16x4xbf16>
    %36 = vector.extract_strided_slice %32 {offsets = [1, 0, 0], sizes = [2, 16, 4], strides = [1, 1, 1]} : vector<4x32x4xbf16> to vector<2x16x4xbf16>
    %37 = vector.extract_strided_slice %32 {offsets = [1, 1, 0], sizes = [2, 16, 4], strides = [1, 1, 1]} : vector<4x32x4xbf16> to vector<2x16x4xbf16>
    %38 = vector.extract_strided_slice %32 {offsets = [1, 2, 0], sizes = [2, 16, 4], strides = [1, 1, 1]} : vector<4x32x4xbf16> to vector<2x16x4xbf16>
    %39 = vector.extract_strided_slice %32 {offsets = [2, 0, 0], sizes = [2, 16, 4], strides = [1, 1, 1]} : vector<4x32x4xbf16> to vector<2x16x4xbf16>
    %40 = vector.extract_strided_slice %32 {offsets = [2, 1, 0], sizes = [2, 16, 4], strides = [1, 1, 1]} : vector<4x32x4xbf16> to vector<2x16x4xbf16>
    %41 = vector.extract_strided_slice %32 {offsets = [2, 2, 0], sizes = [2, 16, 4], strides = [1, 1, 1]} : vector<4x32x4xbf16> to vector<2x16x4xbf16>
    %42 = tpu.concatenate %33, %34, %35, %36, %37, %38, %39, %40, %41 in 2 : vector<2x16x4xbf16>, vector<2x16x4xbf16>, vector<2x16x4xbf16>, vector<2x16x4xbf16>, vector<2x16x4xbf16>, vector<2x16x4xbf16>, vector<2x16x4xbf16>, vector<2x16x4xbf16>, vector<2x16x4xbf16> -> vector<2x16x36xbf16>
    %cst_19 = arith.constant dense<0.000000e+00> : vector<2x16x4xf32>
    %43 = tpu.matmul %42, %0, %cst_19 {dimension_numbers = #tpu.dot_dimension_numbers<[2], [0], [0, 1], [1], [0, 0, 0, 1, 1, 1], [], []>} : vector<2x16x36xbf16>, vector<36x4xbf16>, vector<2x16x4xf32> -> vector<2x16x4xf32>
    %44 = vector.broadcast %2 : vector<1x1x4xf32> to vector<2x16x4xf32>
    %45 = arith.addf %43, %44 : vector<2x16x4xf32>
    %cst_20 = arith.constant 0.000000e+00 : f32
    %46 = vector.broadcast %cst_20 : f32 to vector<2x16x4xf32>
    %47 = arith.maximumf %45, %46 : vector<2x16x4xf32>
    %48 = arith.truncf %47 : vector<2x16x4xf32> to vector<2x16x4xbf16>
    %c8_21 = arith.constant 8 : index
    %c1_22 = arith.constant 1 : index
    %c0_23 = arith.constant 0 : index
    %49 = vector.load %arg8[%c8_21, %c1_22, %c0_23] : memref<10x32x4xbf16, #tpu.memory_space<vmem>>, vector<2x16x4xbf16>
    tpu.vector_store %arg8[%c8_21, %c1_22, %c0_23], %48 {strides = array<i32>} : memref<10x32x4xbf16, #tpu.memory_space<vmem>>, vector<2x16x4xbf16>,
    %c0_24 = arith.constant 0 : index
    %c0_25 = arith.constant 0 : index
    %c0_26 = arith.constant 0 : index
    %50 = vector.load %arg8[%c0_24, %c0_25, %c0_26] : memref<10x32x4xbf16, #tpu.memory_space<vmem>>, vector<10x1x4xbf16>
    tpu.vector_store %arg8[%c0_24, %c0_25, %c0_26], %4 {strides = array<i32>} : memref<10x32x4xbf16, #tpu.memory_space<vmem>>, vector<10x1x4xbf16>,
    %c0_27 = arith.constant 0 : index
    %c17 = arith.constant 17 : index
    %c0_28 = arith.constant 0 : index
    %51 = vector.load %arg8[%c0_27, %c17, %c0_28] : memref<10x32x4xbf16, #tpu.memory_space<vmem>>, vector<10x1x4xbf16>
    tpu.vector_store %arg8[%c0_27, %c17, %c0_28], %4 {strides = array<i32>} : memref<10x32x4xbf16, #tpu.memory_space<vmem>>, vector<10x1x4xbf16>,
    %c0_i32_29 = arith.constant 0 : i32
    %52 = arith.cmpi eq, %arg1, %c0_i32_29 : i32
    %53 = arith.extui %52 : i1 to i32
    %c0_i32_30 = arith.constant 0 : i32
    %54 = arith.cmpi ne, %53, %c0_i32_30 : i32
    scf.if %54 {
      %c0_48 = arith.constant 0 : index
      %c0_49 = arith.constant 0 : index
      %c0_50 = arith.constant 0 : index
      %91 = vector.load %arg8[%c0_48, %c0_49, %c0_50] : memref<10x32x4xbf16, #tpu.memory_space<vmem>>, vector<1x32x4xbf16>
      tpu.vector_store %arg8[%c0_48, %c0_49, %c0_50], %5 {strides = array<i32>} : memref<10x32x4xbf16, #tpu.memory_space<vmem>>, vector<1x32x4xbf16>,
    } else {
    }
    %c8_i32_31 = arith.constant 8 : i32
    %55 = arith.muli %arg1, %c8_i32_31 : i32
    %c16_i32 = arith.constant 16 : i32
    %56 = arith.subi %c16_i32, %55 : i32
    %c1_i32_32 = arith.constant 1 : i32
    %57 = arith.addi %56, %c1_i32_32 : i32
    %c0_i32_33 = arith.constant 0 : i32
    %58 = arith.cmpi sge, %57, %c0_i32_33 : i32
    %c9_i32 = arith.constant 9 : i32
    %59 = arith.cmpi sle, %57, %c9_i32 : i32
    %60 = arith.andi %58, %59 : i1
    %61 = arith.extui %60 : i1 to i32
    %c0_i32_34 = arith.constant 0 : i32
    %62 = arith.cmpi ne, %61, %c0_i32_34 : i32
    scf.if %62 {
      %c0_i32_48 = arith.constant 0 : i32
      %c9_i32_49 = arith.constant 9 : i32
      %91 = arith.maxsi %c0_i32_48, %57 : i32
      %92 = arith.minsi %c9_i32_49, %91 : i32
      %93 = arith.index_cast %92 : i32 to index
      %c0_50 = arith.constant 0 : index
      %c0_51 = arith.constant 0 : index
      %94 = vector.load %arg8[%93, %c0_50, %c0_51] : memref<10x32x4xbf16, #tpu.memory_space<vmem>>, vector<1x32x4xbf16>
      tpu.vector_store %arg8[%93, %c0_50, %c0_51], %5 {strides = array<i32>} : memref<10x32x4xbf16, #tpu.memory_space<vmem>>, vector<1x32x4xbf16>,
    } else {
    }
    %c0_i32_35 = arith.constant 0 : i32
    %c8_i32_36 = arith.constant 8 : i32
    %63 = arith.muli %c0_i32_35, %c8_i32_36 : i32
    %64 = tpu.assume_multiple %63, 8 : i32
    %65 = arith.index_cast %64 : i32 to index
    %c0_37 = arith.constant 0 : index
    %c0_38 = arith.constant 0 : index
    %66 = vector.load %arg8[%65, %c0_37, %c0_38] : memref<10x32x4xbf16, #tpu.memory_space<vmem>>, vector<10x32x4xbf16>
    %67 = vector.extract_strided_slice %66 {offsets = [0, 0, 0], sizes = [8, 16, 4], strides = [1, 1, 1]} : vector<10x32x4xbf16> to vector<8x16x4xbf16>
    %68 = vector.extract_strided_slice %66 {offsets = [0, 1, 0], sizes = [8, 16, 4], strides = [1, 1, 1]} : vector<10x32x4xbf16> to vector<8x16x4xbf16>
    %69 = vector.extract_strided_slice %66 {offsets = [0, 2, 0], sizes = [8, 16, 4], strides = [1, 1, 1]} : vector<10x32x4xbf16> to vector<8x16x4xbf16>
    %70 = vector.extract_strided_slice %66 {offsets = [1, 0, 0], sizes = [8, 16, 4], strides = [1, 1, 1]} : vector<10x32x4xbf16> to vector<8x16x4xbf16>
    %71 = vector.extract_strided_slice %66 {offsets = [1, 1, 0], sizes = [8, 16, 4], strides = [1, 1, 1]} : vector<10x32x4xbf16> to vector<8x16x4xbf16>
    %72 = vector.extract_strided_slice %66 {offsets = [1, 2, 0], sizes = [8, 16, 4], strides = [1, 1, 1]} : vector<10x32x4xbf16> to vector<8x16x4xbf16>
    %73 = vector.extract_strided_slice %66 {offsets = [2, 0, 0], sizes = [8, 16, 4], strides = [1, 1, 1]} : vector<10x32x4xbf16> to vector<8x16x4xbf16>
    %74 = vector.extract_strided_slice %66 {offsets = [2, 1, 0], sizes = [8, 16, 4], strides = [1, 1, 1]} : vector<10x32x4xbf16> to vector<8x16x4xbf16>
    %75 = vector.extract_strided_slice %66 {offsets = [2, 2, 0], sizes = [8, 16, 4], strides = [1, 1, 1]} : vector<10x32x4xbf16> to vector<8x16x4xbf16>
    %76 = tpu.concatenate %67, %68, %69, %70, %71, %72, %73, %74, %75 in 2 : vector<8x16x4xbf16>, vector<8x16x4xbf16>, vector<8x16x4xbf16>, vector<8x16x4xbf16>, vector<8x16x4xbf16>, vector<8x16x4xbf16>, vector<8x16x4xbf16>, vector<8x16x4xbf16>, vector<8x16x4xbf16> -> vector<8x16x36xbf16>
    %cst_39 = arith.constant dense<0.000000e+00> : vector<8x16x4xf32>
    %77 = tpu.matmul %76, %1, %cst_39 {dimension_numbers = #tpu.dot_dimension_numbers<[2], [0], [0, 1], [1], [0, 0, 0, 1, 1, 1], [], []>} : vector<8x16x36xbf16>, vector<36x4xbf16>, vector<8x16x4xf32> -> vector<8x16x4xf32>
    %78 = vector.broadcast %3 : vector<1x1x4xf32> to vector<8x16x4xf32>
    %79 = arith.addf %77, %78 : vector<8x16x4xf32>
    %c2_i32 = arith.constant 2 : i32
    %80 = arith.addi %64, %c2_i32 : i32
    %c0_40 = arith.constant 0 : index
    %81 = arith.index_cast %80 : i32 to index
    %c1_41 = arith.constant 1 : index
    %c0_42 = arith.constant 0 : index
    %82 = vector.load %arg2[%c0_40, %81, %c1_41, %c0_42] : memref<1x12x32x4xf32, #tpu.memory_space<vmem>>, vector<1x8x16x4xf32>
    %83 = vector.shape_cast %82 : vector<1x8x16x4xf32> to vector<8x16x4xf32>
    %cst_43 = arith.constant 1.000000e+00 : f32
    %84 = vector.broadcast %cst_43 : f32 to vector<8x16x4xf32>
    %85 = arith.mulf %79, %84 : vector<8x16x4xf32>
    %86 = arith.addf %83, %85 : vector<8x16x4xf32>
    %c0_44 = arith.constant 0 : index
    %87 = arith.index_cast %64 : i32 to index
    %c0_45 = arith.constant 0 : index
    %c0_46 = arith.constant 0 : index
    %88 = vector.load %arg7[%c0_44, %87, %c0_45, %c0_46] : memref<1x8x16x4xf32, #tpu.memory_space<vmem>>, vector<1x8x16x4xf32>
    %89 = vector.shape_cast %88 : vector<1x8x16x4xf32> to vector<8x16x4xf32>
    %90 = vector.shape_cast %86 : vector<8x16x4xf32> to vector<1x8x16x4xf32>
    tpu.vector_store %arg7[%c0_44, %87, %c0_45, %c0_46], %90 {strides = array<i32>} : memref<1x8x16x4xf32, #tpu.memory_space<vmem>>, vector<1x8x16x4xf32>,
    %c1_i32_47 = arith.constant 1 : i32
    return
  }
  func.func @transform_0(%arg0: i32, %arg1: i32) -> (i32, i32, i32, i32) {
    %c2_i32 = arith.constant 2 : i32
    %0 = arith.muli %arg0, %c2_i32 : i32
    %1 = arith.addi %0, %arg1 : i32
    %c0_i32 = arith.constant 0 : i32
    %c0_i32_0 = arith.constant 0 : i32
    %c0_i32_1 = arith.constant 0 : i32
    %c0_i32_2 = arith.constant 0 : i32
    return %1, %c0_i32, %c0_i32_0, %c0_i32_1 : i32, i32, i32, i32
  }
  func.func @transform_1(%arg0: i32, %arg1: i32) -> (i32, i32) {
    %c0_i32 = arith.constant 0 : i32
    %c0_i32_0 = arith.constant 0 : i32
    %c0_i32_1 = arith.constant 0 : i32
    return %c0_i32, %c0_i32_0 : i32, i32
  }
  func.func @transform_2(%arg0: i32, %arg1: i32) -> (i32, i32, i32) {
    %c0_i32 = arith.constant 0 : i32
    %c0_i32_0 = arith.constant 0 : i32
    %c0_i32_1 = arith.constant 0 : i32
    %c0_i32_2 = arith.constant 0 : i32
    return %c0_i32, %c0_i32_0, %c0_i32_1 : i32, i32, i32
  }
  func.func @transform_3(%arg0: i32, %arg1: i32) -> (i32, i32) {
    %c0_i32 = arith.constant 0 : i32
    %c0_i32_0 = arith.constant 0 : i32
    %c0_i32_1 = arith.constant 0 : i32
    return %c0_i32, %c0_i32_0 : i32, i32
  }
  func.func @transform_4(%arg0: i32, %arg1: i32) -> (i32, i32, i32) {
    %c0_i32 = arith.constant 0 : i32
    %c0_i32_0 = arith.constant 0 : i32
    %c0_i32_1 = arith.constant 0 : i32
    %c0_i32_2 = arith.constant 0 : i32
    return %c0_i32, %c0_i32_0, %c0_i32_1 : i32, i32, i32
  }
  func.func @transform_5(%arg0: i32, %arg1: i32) -> (i32, i32, i32, i32) {
    %c0_i32 = arith.constant 0 : i32
    %c0_i32_0 = arith.constant 0 : i32
    %c0_i32_1 = arith.constant 0 : i32
    return %arg0, %arg1, %c0_i32, %c0_i32_0 : i32, i32, i32, i32
  }
}

</mosaic_0001>

<llo_original>
// kernel: tpu_custom_call.1
$region0: #{tpu_custom_call.1}
  #allocation0 [shape = 'u32[]', space=smem, size = 0x4, offset = 0x4, fixed_abs, tag = 'smem constant byte address 0x4 - core index']
  #allocation1 [shape = 'u32[144,128]{1,0:T(1,128)}', space=vmem, size = 0x12000, scoped, tag = 'internal scratch']
  #allocation2 [shape = 'bf16[10,32,4]{2,1,0:T(16,128)(2,1)}', space=vmem, size = 0x14000, scoped, tag = 'scratch operand']
  %s0 = inlined_call_operand.vmem [shape: f32[4,12,32,4], index: 0, kind: input, shape index: {}]
  %s1 = inlined_call_operand.vmem [shape: bf16[36,4], index: 1, kind: input, shape index: {}]
  %s2 = inlined_call_operand.vmem [shape: f32[1,1,4], index: 2, kind: input, shape index: {}]
  %s3 = inlined_call_operand.vmem [shape: bf16[36,4], index: 3, kind: input, shape index: {}]
  %s4 = inlined_call_operand.vmem [shape: f32[1,1,4], index: 4, kind: input, shape index: {}]
  %s5 = inlined_call_operand.vmem [shape: f32[2,16,16,4], index: 5, kind: output, shape index: {}]
  %s6 = sld [smem:[#allocation0]]
  $region61: #{tpu_custom_call.1} parent=0
    _
  %s8 = ssub.s32 1, %s6
  %s9 = scalar_select 0, %s8, %s6
  loop: start=0, step=1, limit=6
  $region2: #{tpu_custom_call.1} parent=0 // loop_pre_header
    _
  $region3: #{tpu_custom_call.1} parent=0 // loop_header
    %s11 = sphi 0, %s15
    %p12 = scmp.ge.s32.totalorder %s11, 6
    %s18 = sphi 0, %s30
    %s19 = sphi 0, %s26
    %s20 = sphi 0, %s18
    %s21 = sphi 0, %s19
    %s22 = sphi 0, %s20
    %s23 = sphi 0, %s21
    %s37 = sphi 0, %s39
    %s40 = sphi 0, %s37
    %s41 = sphi 0, %s40
    %s57 = sphi 0, %s41
    %s61 = sphi 0, %s61
    %s63 = sphi 0, %s61
    %s64 = sphi 0, %s63
    %s78 = sphi 0, %s64
    %s82 = sphi 0, %s82
    %s84 = sphi 0, %s82
    %s85 = sphi 0, %s84
    %s99 = sphi 0, %s85
    %s103 = sphi 0, %s103
    %s105 = sphi 0, %s103
    %s106 = sphi 0, %s105
    %s120 = sphi 0, %s106
    %s124 = sphi 0, %s124
    %s126 = sphi 0, %s124
    %s127 = sphi 0, %s126
    %s141 = sphi 0, %s127
    %s149 = sphi 0, %s151
    %s152 = sphi 0, %s149
    %s153 = sphi 0, %s152
    %s169 = sphi 0, %s153
  $region4: #{tpu_custom_call.1} parent=0 // loop_header_branch
    %14 = sbr.rel (%p12) target = $region8
  $region5: #{tpu_custom_call.1} parent=0 // loop_body
    %s16 = ssub.s32 %s11, 1
    %s17 = ssub.s32 %s11, 2
    %s24 = sadd.s32 1, %s19
    %p25 = scmp.ge.s32.totalorder %s24, 2
    %s26 = scalar_select %p25, 0, %s24
    %s27 = sadd.s32 1, %s18
    %s28 = scalar_select %p25, %s27, %s18
    %p29 = scmp.ge.s32.totalorder %s28, 2
    %s30 = scalar_select %p29, 0, %s28
    %s31 = smul.u32 %s18, 2
    %s32 = sadd.s32 %s31, %s19
    %s33 = smul.u32 %s30, 2
    %s34 = sadd.s32 %s33, %s26
    %s35 = ssub.s32 %s32, %s34
    %p36 = scmp.eq.s32.totalorder %s35, 0
    %s38 = sadd.s32 %s37, 1
    %s39 = scalar_select %p36, %s37, %s38
    %p42 = pneg %p36
    %p43 = scmp.eq.s32.totalorder %s11, 3
    %p44 = por %p42, %p43
    %p45 = scmp.ne.s32.totalorder %s37, %s40
    %p46 = scmp.eq.s32.totalorder %s11, 0
    %p47 = por %p45, %p46
    %p48 = scmp.ne.s32.totalorder %s37, %s40
    %p49 = scmp.eq.s32.totalorder %s16, 3
    %p50 = por %p48, %p49
    %p51 = scmp.ne.s32.totalorder %s40, %s41
    %p52 = scmp.eq.s32.totalorder %s16, 0
    %p53 = por %p51, %p52
    %p54 = scmp.ne.s32.totalorder %s40, %s41
    %p55 = scmp.eq.s32.totalorder %s17, 3
    %p56 = por %p54, %p55
    %p58 = scmp.ne.s32.totalorder %s41, %s57
    %p59 = scmp.eq.s32.totalorder %s17, 0
    %p60 = por %p58, %p59
    %s62 = sadd.s32 %s61, 1
    %p65 = scmp.eq.s32.totalorder %s11, 3
    %p66 = scmp.ne.s32.totalorder %s61, %s63
    %p67 = scmp.eq.s32.totalorder %s11, 0
    %p68 = por %p66, %p67
    %p69 = scmp.ne.s32.totalorder %s61, %s63
    %p70 = scmp.eq.s32.totalorder %s16, 3
    %p71 = por %p69, %p70
    %p72 = scmp.ne.s32.totalorder %s63, %s64
    %p73 = scmp.eq.s32.totalorder %s16, 0
    %p74 = por %p72, %p73
    %p75 = scmp.ne.s32.totalorder %s63, %s64
    %p76 = scmp.eq.s32.totalorder %s17, 3
    %p77 = por %p75, %p76
    %p79 = scmp.ne.s32.totalorder %s64, %s78
    %p80 = scmp.eq.s32.totalorder %s17, 0
    %p81 = por %p79, %p80
    %s83 = sadd.s32 %s82, 1
    %p86 = scmp.eq.s32.totalorder %s11, 3
    %p87 = scmp.ne.s32.totalorder %s82, %s84
    %p88 = scmp.eq.s32.totalorder %s11, 0
    %p89 = por %p87, %p88
    %p90 = scmp.ne.s32.totalorder %s82, %s84
    %p91 = scmp.eq.s32.totalorder %s16, 3
    %p92 = por %p90, %p91
    %p93 = scmp.ne.s32.totalorder %s84, %s85
    %p94 = scmp.eq.s32.totalorder %s16, 0
    %p95 = por %p93, %p94
    %p96 = scmp.ne.s32.totalorder %s84, %s85
    %p97 = scmp.eq.s32.totalorder %s17, 3
    %p98 = por %p96, %p97
    %p100 = scmp.ne.s32.totalorder %s85, %s99
    %p101 = scmp.eq.s32.totalorder %s17, 0
    %p102 = por %p100, %p101
    %s104 = sadd.s32 %s103, 1
    %p107 = scmp.eq.s32.totalorder %s11, 3
    %p108 = scmp.ne.s32.totalorder %s103, %s105
    %p109 = scmp.eq.s32.totalorder %s11, 0
    %p110 = por %p108, %p109
    %p111 = scmp.ne.s32.totalorder %s103, %s105
    %p112 = scmp.eq.s32.totalorder %s16, 3
    %p113 = por %p111, %p112
    %p114 = scmp.ne.s32.totalorder %s105, %s106
    %p115 = scmp.eq.s32.totalorder %s16, 0
    %p116 = por %p114, %p115
    %p117 = scmp.ne.s32.totalorder %s105, %s106
    %p118 = scmp.eq.s32.totalorder %s17, 3
    %p119 = por %p117, %p118
    %p121 = scmp.ne.s32.totalorder %s106, %s120
    %p122 = scmp.eq.s32.totalorder %s17, 0
    %p123 = por %p121, %p122
    %s125 = sadd.s32 %s124, 1
    %p128 = scmp.eq.s32.totalorder %s11, 3
    %p129 = scmp.ne.s32.totalorder %s124, %s126
    %p130 = scmp.eq.s32.totalorder %s11, 0
    %p131 = por %p129, %p130
    %p132 = scmp.ne.s32.totalorder %s124, %s126
    %p133 = scmp.eq.s32.totalorder %s16, 3
    %p134 = por %p132, %p133
    %p135 = scmp.ne.s32.totalorder %s126, %s127
    %p136 = scmp.eq.s32.totalorder %s16, 0
    %p137 = por %p135, %p136
    %p138 = scmp.ne.s32.totalorder %s126, %s127
    %p139 = scmp.eq.s32.totalorder %s17, 3
    %p140 = por %p138, %p139
    %p142 = scmp.ne.s32.totalorder %s127, %s141
    %p143 = scmp.eq.s32.totalorder %s17, 0
    %p144 = por %p142, %p143
    %s145 = ssub.s32 %s18, %s30
    %s146 = ssub.s32 %s19, %s26
    %s147 = sor.u32 %s145, %s146
    %p148 = scmp.eq.s32.totalorder %s147, 0
    %s150 = sadd.s32 %s149, 1
    %s151 = scalar_select %p148, %s149, %s150
    %p154 = pneg %p148
    %p155 = scmp.eq.s32.totalorder %s11, 3
    %p156 = por %p154, %p155
    %p157 = scmp.ne.s32.totalorder %s149, %s152
    %p158 = scmp.eq.s32.totalorder %s11, 0
    %p159 = por %p157, %p158
    %p160 = scmp.ne.s32.totalorder %s149, %s152
    %p161 = scmp.eq.s32.totalorder %s16, 3
    %p162 = por %p160, %p161
    %p163 = scmp.ne.s32.totalorder %s152, %s153
    %p164 = scmp.eq.s32.totalorder %s16, 0
    %p165 = por %p163, %p164
    %p166 = scmp.ne.s32.totalorder %s152, %s153
    %p167 = scmp.eq.s32.totalorder %s17, 3
    %p168 = por %p166, %p167
    %p170 = scmp.ne.s32.totalorder %s153, %s169
    %p171 = scmp.eq.s32.totalorder %s17, 0
    %p172 = por %p170, %p171
    %p173 = scmp.le.s32.totalorder 1, %s11
    %p174 = scmp.lt.s32.totalorder %s11, 5
    %p175 = pnand %p173, %p174
    %p176 = pneg %p175
    // Predicated region
    $region9: #{tpu_custom_call.1} parent=5 // pred_check
      _
    $region10: #{tpu_custom_call.1} parent=5 // pred_check_branch
      %178 = sbr.rel (%p175) target = $region12
    $region11: #{tpu_custom_call.1} parent=5 // pred_region
      %s179 = ssub.s32 %s11, 1
      // Predicated region
      $region13: #{tpu_custom_call.1} parent=11 // pred_check
        %p180 = pneg %p74
      $region14: #{tpu_custom_call.1} parent=11 // pred_check_branch
        %182 = sbr.rel (%p180) target = $region16
      $region15: #{tpu_custom_call.1} parent=11 // pred_region
        _
      $region16: #{tpu_custom_call.1} parent=11 // pred_fallthru
        _
      // Predicated region
      $region17: #{tpu_custom_call.1} parent=11 // pred_check
        %p183 = pneg %p95
      $region18: #{tpu_custom_call.1} parent=11 // pred_check_branch
        %185 = sbr.rel (%p183) target = $region20
      $region19: #{tpu_custom_call.1} parent=11 // pred_region
        _
      $region20: #{tpu_custom_call.1} parent=11 // pred_fallthru
        _
      // Predicated region
      $region21: #{tpu_custom_call.1} parent=11 // pred_check
        %p186 = pneg %p116
      $region22: #{tpu_custom_call.1} parent=11 // pred_check_branch
        %188 = sbr.rel (%p186) target = $region24
      $region23: #{tpu_custom_call.1} parent=11 // pred_region
        _
      $region24: #{tpu_custom_call.1} parent=11 // pred_fallthru
        _
      // Predicated region
      $region25: #{tpu_custom_call.1} parent=11 // pred_check
        %p189 = pneg %p137
      $region26: #{tpu_custom_call.1} parent=11 // pred_check_branch
        %191 = sbr.rel (%p189) target = $region28
      $region27: #{tpu_custom_call.1} parent=11 // pred_region
        _
      $region28: #{tpu_custom_call.1} parent=11 // pred_fallthru
        _
    $region12: #{tpu_custom_call.1} parent=5 // pred_fallthru
      _
    %p192 = scmp.lt.s32.totalorder %s11, 4
    // Predicated region
    $region29: #{tpu_custom_call.1} parent=5 // pred_check
      %p193 = pneg %p192
    $region30: #{tpu_custom_call.1} parent=5 // pred_check_branch
      %195 = sbr.rel (%p193) target = $region32
    $region31: #{tpu_custom_call.1} parent=5 // pred_region
      // Predicated region
      $region33: #{tpu_custom_call.1} parent=31 // pred_check
        %p196 = pneg %p47
      $region34: #{tpu_custom_call.1} parent=31 // pred_check_branch
        %198 = sbr.rel (%p196) target = $region36
      $region35: #{tpu_custom_call.1} parent=31 // pred_region
        %s199 = smul.u32 %s18, 2
        %s200 = sadd.s32 %s199, %s19
        %p201 = scmp.lt.s32.totalorder %s200, 3
        %s202 = scalar_select %p201, %s200, 3
        %s203 = smul.addr %s202, 48
        %s204 = smul.addr %s203, 8
        %s205 = scalar_lea.vmem %s0, %s204
        %s206 = smul.u32 %s18, 2
        %s207 = sadd.s32 %s206, %s19
      $region36: #{tpu_custom_call.1} parent=31 // pred_fallthru
        _
    $region32: #{tpu_custom_call.1} parent=5 // pred_fallthru
      _
    %p208 = scmp.le.s32.totalorder 1, %s11
    %p209 = scmp.lt.s32.totalorder %s11, 5
    %p210 = pnand %p208, %p209
    %p211 = pneg %p210
    // Predicated region
    $region37: #{tpu_custom_call.1} parent=5 // pred_check
      _
    $region38: #{tpu_custom_call.1} parent=5 // pred_check_branch
      %213 = sbr.rel (%p210) target = $region40
    $region39: #{tpu_custom_call.1} parent=5 // pred_region
      %s214 = ssub.s32 %s11, 1
      %s215 = smul.u32 %s20, 2
      %s216 = sadd.s32 %s215, %s21
      %p217 = scmp.lt.s32.totalorder %s216, 3
      %s218 = scalar_select %p217, %s216, 3
      %s219 = smul.addr %s218, 48
      %s220 = smul.addr %s219, 8
      %s221 = scalar_lea.vmem %s0, %s220
      %p222 = pneg %p53
      %p223 = pneg %p50
      %p224 = pneg %p74
      %p225 = pneg %p71
      %p226 = pneg %p95
      %p227 = pneg %p92
      %p228 = pneg %p116
      %p229 = pneg %p113
      %p230 = pneg %p137
      %p231 = pneg %p134
      %p232 = pneg %p165
      %p233 = pneg %p162
      %s234 = smul.u32 8, %s21
      %p235 = scmp.lt.s32.totalorder %s20, 1
      %s236 = scalar_select %p235, %s20, 1
      %p237 = scmp.lt.s32.totalorder %s234, 15
      %s238 = scalar_select %p237, %s234, 15
      %s239 = smul.addr %s238, 2
      %s240 = smul.addr %s236, 32
      %s241 = sadd.s32 %s239, %s240
      %s242 = smul.addr %s241, 8
      %s243 = scalar_lea.vmem %s5, %s242
      %s244 = smul.u32 %s20, 2
      %s245 = sadd.s32 %s244, %s21
      %p246 = scmp.lt.s32.totalorder %s245, 3
      %s247 = scalar_select %p246, %s245, 3
      %s248 = smul.addr %s247, 48
      %s249 = smul.addr %s248, 8
      %s250 = scalar_lea.vmem %s0, %s249
      %s251 = smul.u32 %s20, 2
      %s252 = sadd.s32 %s251, %s21
      %s253 = smul.u32 8, %s21
      %p254 = scmp.lt.s32.totalorder %s20, 1
      %s255 = scalar_select %p254, %s20, 1
      %p256 = scmp.lt.s32.totalorder %s253, 15
      %s257 = scalar_select %p256, %s253, 15
      %s258 = smul.addr %s257, 2
      %s259 = smul.addr %s255, 32
      %s260 = sadd.s32 %s258, %s259
      %s261 = smul.addr %s260, 8
      %s262 = scalar_lea.vmem %s5, %s261
      %s263 = smul.u32 8, %s21
      %v265 = vld [vmem:[%s1] sm:$0xf]
      %v266 = vld [vmem:[%s1 + $0x4] sm:$0xf]
      %v267 = vld [vmem:[%s1 + $0x8] sm:$0xf]
      %v268 = vld [vmem:[%s1 + $0xc] sm:$0xf]
      %v269 = vld [vmem:[%s1 + $0x10] sm:$0x3]
      %v270 = vld [vmem:[%s3] sm:$0xf]
      %v271 = vld [vmem:[%s3 + $0x4] sm:$0xf]
      %v272 = vld [vmem:[%s3 + $0x8] sm:$0xf]
      %v273 = vld [vmem:[%s3 + $0xc] sm:$0xf]
      %v274 = vld [vmem:[%s3 + $0x10] sm:$0x3]
      %v275 = vld [vmem:[%s2] sm:$0x1]
      %v276 = vld [vmem:[%s4] sm:$0x1]
      %s277 = smul.u32 0, 32
      %s278 = scalar_lea.vmem %s250, %s277
      %v279 = vld [vmem:[%s278] sm:$0xff]
      %v280 = vld [vmem:[%s278 + $0x8] sm:$0xff]
      %v281 = vld [vmem:[%s278 + $0x10] sm:$0xff]
      %v282 = vld [vmem:[%s278 + $0x18] sm:$0xff]
      %v283 = vld [vmem:[%s278 + $0x20] sm:$0xff]
      %v284 = vld [vmem:[%s278 + $0x28] sm:$0xff]
      %v285 = vld [vmem:[%s278 + $0x30] sm:$0xff]
      %v286 = vld [vmem:[%s278 + $0x38] sm:$0xff]
      %v287 = vld [vmem:[%s278 + $0x40] sm:$0xff]
      %v288 = vld [vmem:[%s278 + $0x48] sm:$0xff]
      %v289 = vld [vmem:[%s278 + $0x50] sm:$0xff]
      %v290 = vld [vmem:[%s278 + $0x58] sm:$0xff]
      %v291 = vld [vmem:[%s278 + $0x60] sm:$0xff]
      %v292 = vld [vmem:[%s278 + $0x68] sm:$0xff]
      %v293 = vld [vmem:[%s278 + $0x70] sm:$0xff]
      %v294 = vld [vmem:[%s278 + $0x78] sm:$0xff]
      %v295 = vld [vmem:[%s278 + $0x80] sm:$0xff]
      %v296 = vld [vmem:[%s278 + $0x88] sm:$0xff]
      %v297 = vld [vmem:[%s278 + $0x90] sm:$0xff]
      %v298 = vld [vmem:[%s278 + $0x98] sm:$0xff]
      %v299 = vld [vmem:[%s278 + $0xa0] sm:$0xff]
      %v300 = vld [vmem:[%s278 + $0xa8] sm:$0xff]
      %v301 = vld [vmem:[%s278 + $0xb0] sm:$0xff]
      %v302 = vld [vmem:[%s278 + $0xb8] sm:$0xff]
      %v303 = vld [vmem:[%s278 + $0xc0] sm:$0xff]
      %v304 = vld [vmem:[%s278 + $0xc8] sm:$0xff]
      %v305 = vld [vmem:[%s278 + $0xd0] sm:$0xff]
      %v306 = vld [vmem:[%s278 + $0xd8] sm:$0xff]
      %v307 = vld [vmem:[%s278 + $0xe0] sm:$0xff]
      %v308 = vld [vmem:[%s278 + $0xe8] sm:$0xff]
      %v309 = vld [vmem:[%s278 + $0xf0] sm:$0xff]
      %v310 = vld [vmem:[%s278 + $0xf8] sm:$0xff]
      %v311 = vld [vmem:[%s278 + $0x100] sm:$0xff]
      %v312 = vld [vmem:[%s278 + $0x108] sm:$0xff]
      %v313 = vld [vmem:[%s278 + $0x110] sm:$0xff]
      %v314 = vld [vmem:[%s278 + $0x118] sm:$0xff]
      %v315 = vld [vmem:[%s278 + $0x120] sm:$0xff]
      %v316 = vld [vmem:[%s278 + $0x128] sm:$0xff]
      %v317 = vld [vmem:[%s278 + $0x130] sm:$0xff]
      %v318 = vld [vmem:[%s278 + $0x138] sm:$0xff]
      %v319 = vpack.c.bf16 %v280, %v279
      %v320 = vpack.c.bf16 %v282, %v281
      %v321 = vpack.c.bf16 %v284, %v283
      %v322 = vpack.c.bf16 %v286, %v285
      %v323 = vpack.c.bf16 %v288, %v287
      %v324 = vpack.c.bf16 %v290, %v289
      %v325 = vpack.c.bf16 %v292, %v291
      %v326 = vpack.c.bf16 %v294, %v293
      %v327 = vpack.c.bf16 %v296, %v295
      %v328 = vpack.c.bf16 %v298, %v297
      %v329 = vpack.c.bf16 %v300, %v299
      %v330 = vpack.c.bf16 %v302, %v301
      %v331 = vpack.c.bf16 %v304, %v303
      %v332 = vpack.c.bf16 %v306, %v305
      %v333 = vpack.c.bf16 %v308, %v307
      %v334 = vpack.c.bf16 %v310, %v309
      %v335 = vpack.c.bf16 %v312, %v311
      %v336 = vpack.c.bf16 %v314, %v313
      %v337 = vpack.c.bf16 %v316, %v315
      %v338 = vpack.c.bf16 %v318, %v317
      %vm339 = vsmask.f32 7424
      %v341 = vshrl.u32 %v319, 16
      %v343 = vshll.u32 %v319, 16
      %v345 = vrot.slane %v343, 1
      %v346 = vor.u32 %v341, %v345
      %v348 = vshll.u32 %v320, 16
      %v350 = vrot.slane %v348, 1
      %v351 = vsel %vm339, %v346, %v350
      %v353 = vshrl.u32 %v321, 16
      %v355 = vshll.u32 %v321, 16
      %v357 = vrot.slane %v355, 1
      %v358 = vor.u32 %v353, %v357
      %v360 = vshll.u32 %v322, 16
      %v362 = vrot.slane %v360, 1
      %v363 = vsel %vm339, %v358, %v362
      %v365 = vshrl.u32 %v323, 16
      %v367 = vshll.u32 %v323, 16
      %v369 = vrot.slane %v367, 1
      %v370 = vor.u32 %v365, %v369
      %v372 = vshll.u32 %v324, 16
      %v374 = vrot.slane %v372, 1
      %v375 = vsel %vm339, %v370, %v374
      %v377 = vshrl.u32 %v325, 16
      %v379 = vshll.u32 %v325, 16
      %v381 = vrot.slane %v379, 1
      %v382 = vor.u32 %v377, %v381
      %v384 = vshll.u32 %v326, 16
      %v386 = vrot.slane %v384, 1
      %v387 = vsel %vm339, %v382, %v386
      %v389 = vshrl.u32 %v327, 16
      %v391 = vshll.u32 %v327, 16
      %v393 = vrot.slane %v391, 1
      %v394 = vor.u32 %v389, %v393
      %v396 = vshll.u32 %v328, 16
      %v398 = vrot.slane %v396, 1
      %v399 = vsel %vm339, %v394, %v398
      %v401 = vshrl.u32 %v329, 16
      %v403 = vshll.u32 %v329, 16
      %v405 = vrot.slane %v403, 1
      %v406 = vor.u32 %v401, %v405
      %v408 = vshll.u32 %v330, 16
      %v410 = vrot.slane %v408, 1
      %v411 = vsel %vm339, %v406, %v410
      %v413 = vshrl.u32 %v331, 16
      %v415 = vshll.u32 %v331, 16
      %v417 = vrot.slane %v415, 1
      %v418 = vor.u32 %v413, %v417
      %v420 = vshll.u32 %v332, 16
      %v422 = vrot.slane %v420, 1
      %v423 = vsel %vm339, %v418, %v422
      %v425 = vshrl.u32 %v333, 16
      %v427 = vshll.u32 %v333, 16
      %v429 = vrot.slane %v427, 1
      %v430 = vor.u32 %v425, %v429
      %v432 = vshll.u32 %v334, 16
      %v434 = vrot.slane %v432, 1
      %v435 = vsel %vm339, %v430, %v434
      %436 = vrot.lane.b32.xlu0 %v351, 4
      %v437 = vpop.permute.xlu0 %436
      %438 = vrot.lane.b32.xlu0 %v363, 4
      %v439 = vpop.permute.xlu0 %438
      %440 = vrot.lane.b32.xlu0 %v375, 4
      %v441 = vpop.permute.xlu0 %440
      %442 = vrot.lane.b32.xlu0 %v387, 4
      %v443 = vpop.permute.xlu0 %442
      %444 = vrot.lane.b32.xlu0 %v399, 4
      %v445 = vpop.permute.xlu0 %444
      %446 = vrot.lane.b32.xlu0 %v411, 4
      %v447 = vpop.permute.xlu0 %446
      %448 = vrot.lane.b32.xlu0 %v423, 4
      %v449 = vpop.permute.xlu0 %448
      %450 = vrot.lane.b32.xlu0 %v435, 4
      %v451 = vpop.permute.xlu0 %450
      %vm468 = vcmask 1046528
      %v469 = vrot.slane %v319, 1
      %v470 = vrot.slane %v320, 1
      %v471 = vsel %vm468, %v469, %v470
      %v472 = vrot.slane %v321, 1
      %v473 = vrot.slane %v322, 1
      %v474 = vsel %vm468, %v472, %v473
      %v475 = vrot.slane %v323, 1
      %v476 = vrot.slane %v324, 1
      %v477 = vsel %vm468, %v475, %v476
      %v478 = vrot.slane %v325, 1
      %v479 = vrot.slane %v326, 1
      %v480 = vsel %vm468, %v478, %v479
      %v481 = vrot.slane %v327, 1
      %v482 = vrot.slane %v328, 1
      %v483 = vsel %vm468, %v481, %v482
      %v484 = vrot.slane %v329, 1
      %v485 = vrot.slane %v330, 1
      %v486 = vsel %vm468, %v484, %v485
      %v487 = vrot.slane %v331, 1
      %v488 = vrot.slane %v332, 1
      %v489 = vsel %vm468, %v487, %v488
      %v490 = vrot.slane %v333, 1
      %v491 = vrot.slane %v334, 1
      %v492 = vsel %vm468, %v490, %v491
      %493 = vrot.lane.b32.xlu0 %v471, 8
      %v494 = vpop.permute.xlu0 %493
      %495 = vrot.lane.b32.xlu0 %v474, 8
      %v496 = vpop.permute.xlu0 %495
      %497 = vrot.lane.b32.xlu0 %v477, 8
      %v498 = vpop.permute.xlu0 %497
      %499 = vrot.lane.b32.xlu0 %v480, 8
      %v500 = vpop.permute.xlu0 %499
      %501 = vrot.lane.b32.xlu0 %v483, 8
      %v502 = vpop.permute.xlu0 %501
      %503 = vrot.lane.b32.xlu0 %v486, 8
      %v504 = vpop.permute.xlu0 %503
      %505 = vrot.lane.b32.xlu0 %v489, 8
      %v506 = vpop.permute.xlu0 %505
      %507 = vrot.lane.b32.xlu0 %v492, 8
      %v508 = vpop.permute.xlu0 %507
      %510 = vrot.lane.b32.xlu0 %v321, 12
      %v511 = vpop.permute.xlu0 %510
      %512 = vrot.lane.b32.xlu0 %v323, 12
      %v513 = vpop.permute.xlu0 %512
      %514 = vrot.lane.b32.xlu0 %v325, 12
      %v515 = vpop.permute.xlu0 %514
      %516 = vrot.lane.b32.xlu0 %v327, 12
      %v517 = vpop.permute.xlu0 %516
      %518 = vrot.lane.b32.xlu0 %v329, 12
      %v519 = vpop.permute.xlu0 %518
      %520 = vrot.lane.b32.xlu0 %v331, 12
      %v521 = vpop.permute.xlu0 %520
      %522 = vrot.lane.b32.xlu0 %v333, 12
      %v523 = vpop.permute.xlu0 %522
      %524 = vrot.lane.b32.xlu0 %v335, 12
      %v525 = vpop.permute.xlu0 %524
      %v527 = vshrl.u32 %v335, 16
      %v529 = vshll.u32 %v335, 16
      %v531 = vrot.slane %v529, 1
      %v532 = vor.u32 %v527, %v531
      %v534 = vshll.u32 %v336, 16
      %v536 = vrot.slane %v534, 1
      %v537 = vsel %vm339, %v532, %v536
      %538 = vrot.lane.b32.xlu0 %v363, 16
      %v539 = vpop.permute.xlu0 %538
      %540 = vrot.lane.b32.xlu0 %v375, 16
      %v541 = vpop.permute.xlu0 %540
      %542 = vrot.lane.b32.xlu0 %v387, 16
      %v543 = vpop.permute.xlu0 %542
      %544 = vrot.lane.b32.xlu0 %v399, 16
      %v545 = vpop.permute.xlu0 %544
      %546 = vrot.lane.b32.xlu0 %v411, 16
      %v547 = vpop.permute.xlu0 %546
      %548 = vrot.lane.b32.xlu0 %v423, 16
      %v549 = vpop.permute.xlu0 %548
      %550 = vrot.lane.b32.xlu0 %v435, 16
      %v551 = vpop.permute.xlu0 %550
      %552 = vrot.lane.b32.xlu0 %v537, 16
      %v553 = vpop.permute.xlu0 %552
      %v555 = vrot.slane %v335, 1
      %v556 = vrot.slane %v336, 1
      %v557 = vsel %vm468, %v555, %v556
      %558 = vrot.lane.b32.xlu0 %v474, 20
      %v559 = vpop.permute.xlu0 %558
      %560 = vrot.lane.b32.xlu0 %v477, 20
      %v561 = vpop.permute.xlu0 %560
      %562 = vrot.lane.b32.xlu0 %v480, 20
      %v563 = vpop.permute.xlu0 %562
      %564 = vrot.lane.b32.xlu0 %v483, 20
      %v565 = vpop.permute.xlu0 %564
      %566 = vrot.lane.b32.xlu0 %v486, 20
      %v567 = vpop.permute.xlu0 %566
      %568 = vrot.lane.b32.xlu0 %v489, 20
      %v569 = vpop.permute.xlu0 %568
      %570 = vrot.lane.b32.xlu0 %v492, 20
      %v571 = vpop.permute.xlu0 %570
      %572 = vrot.lane.b32.xlu0 %v557, 20
      %v573 = vpop.permute.xlu0 %572
      %575 = vrot.lane.b32.xlu0 %v323, 24
      %v576 = vpop.permute.xlu0 %575
      %577 = vrot.lane.b32.xlu0 %v325, 24
      %v578 = vpop.permute.xlu0 %577
      %579 = vrot.lane.b32.xlu0 %v327, 24
      %v580 = vpop.permute.xlu0 %579
      %581 = vrot.lane.b32.xlu0 %v329, 24
      %v582 = vpop.permute.xlu0 %581
      %583 = vrot.lane.b32.xlu0 %v331, 24
      %v584 = vpop.permute.xlu0 %583
      %585 = vrot.lane.b32.xlu0 %v333, 24
      %v586 = vpop.permute.xlu0 %585
      %587 = vrot.lane.b32.xlu0 %v335, 24
      %v588 = vpop.permute.xlu0 %587
      %589 = vrot.lane.b32.xlu0 %v337, 24
      %v590 = vpop.permute.xlu0 %589
      %v592 = vshrl.u32 %v337, 16
      %v594 = vshll.u32 %v337, 16
      %v596 = vrot.slane %v594, 1
      %v597 = vor.u32 %v592, %v596
      %v599 = vshll.u32 %v338, 16
      %v601 = vrot.slane %v599, 1
      %v602 = vsel %vm339, %v597, %v601
      %603 = vrot.lane.b32.xlu0 %v375, 28
      %v604 = vpop.permute.xlu0 %603
      %605 = vrot.lane.b32.xlu0 %v387, 28
      %v606 = vpop.permute.xlu0 %605
      %607 = vrot.lane.b32.xlu0 %v399, 28
      %v608 = vpop.permute.xlu0 %607
      %609 = vrot.lane.b32.xlu0 %v411, 28
      %v610 = vpop.permute.xlu0 %609
      %611 = vrot.lane.b32.xlu0 %v423, 28
      %v612 = vpop.permute.xlu0 %611
      %613 = vrot.lane.b32.xlu0 %v435, 28
      %v614 = vpop.permute.xlu0 %613
      %615 = vrot.lane.b32.xlu0 %v537, 28
      %v616 = vpop.permute.xlu0 %615
      %617 = vrot.lane.b32.xlu0 %v602, 28
      %v618 = vpop.permute.xlu0 %617
      %v620 = vrot.slane %v337, 1
      %v621 = vrot.slane %v338, 1
      %v622 = vsel %vm468, %v620, %v621
      %623 = vrot.lane.b32.xlu0 %v477, 32
      %v624 = vpop.permute.xlu0 %623
      %625 = vrot.lane.b32.xlu0 %v480, 32
      %v626 = vpop.permute.xlu0 %625
      %627 = vrot.lane.b32.xlu0 %v483, 32
      %v628 = vpop.permute.xlu0 %627
      %629 = vrot.lane.b32.xlu0 %v486, 32
      %v630 = vpop.permute.xlu0 %629
      %631 = vrot.lane.b32.xlu0 %v489, 32
      %v632 = vpop.permute.xlu0 %631
      %633 = vrot.lane.b32.xlu0 %v492, 32
      %v634 = vpop.permute.xlu0 %633
      %635 = vrot.lane.b32.xlu0 %v557, 32
      %v636 = vpop.permute.xlu0 %635
      %637 = vrot.lane.b32.xlu0 %v622, 32
      %v638 = vpop.permute.xlu0 %637
      %vm639 = vcmask 31744
      %v641 = vsel %vm639, %v319, %v437
      %v643 = vsel %vm639, %v321, %v439
      %v645 = vsel %vm639, %v323, %v441
      %v647 = vsel %vm639, %v325, %v443
      %v649 = vsel %vm639, %v327, %v445
      %v651 = vsel %vm639, %v329, %v447
      %v653 = vsel %vm639, %v331, %v449
      %v655 = vsel %vm639, %v333, %v451
      %vm656 = vcmask 64512
      %v658 = vsel %vm656, %v641, %v494
      %v660 = vsel %vm656, %v643, %v496
      %v662 = vsel %vm656, %v645, %v498
      %v664 = vsel %vm656, %v647, %v500
      %v666 = vsel %vm656, %v649, %v502
      %v668 = vsel %vm656, %v651, %v504
      %v670 = vsel %vm656, %v653, %v506
      %v672 = vsel %vm656, %v655, %v508
      %vm673 = vcmask 97280
      %v675 = vsel %vm673, %v658, %v511
      %v677 = vsel %vm673, %v660, %v513
      %v679 = vsel %vm673, %v662, %v515
      %v681 = vsel %vm673, %v664, %v517
      %v683 = vsel %vm673, %v666, %v519
      %v685 = vsel %vm673, %v668, %v521
      %v687 = vsel %vm673, %v670, %v523
      %v689 = vsel %vm673, %v672, %v525
      %vm690 = vcmask 130048
      %v692 = vsel %vm690, %v675, %v539
      %v694 = vsel %vm690, %v677, %v541
      %v696 = vsel %vm690, %v679, %v543
      %v698 = vsel %vm690, %v681, %v545
      %v700 = vsel %vm690, %v683, %v547
      %v702 = vsel %vm690, %v685, %v549
      %v704 = vsel %vm690, %v687, %v551
      %v706 = vsel %vm690, %v689, %v553
      %vm707 = vcmask 162816
      %v709 = vsel %vm707, %v692, %v559
      %v711 = vsel %vm707, %v694, %v561
      %v713 = vsel %vm707, %v696, %v563
      %v715 = vsel %vm707, %v698, %v565
      %v717 = vsel %vm707, %v700, %v567
      %v719 = vsel %vm707, %v702, %v569
      %v721 = vsel %vm707, %v704, %v571
      %v723 = vsel %vm707, %v706, %v573
      %vm724 = vcmask 195584
      %v726 = vsel %vm724, %v709, %v576
      %v728 = vsel %vm724, %v711, %v578
      %v730 = vsel %vm724, %v713, %v580
      %v732 = vsel %vm724, %v715, %v582
      %v734 = vsel %vm724, %v717, %v584
      %v736 = vsel %vm724, %v719, %v586
      %v738 = vsel %vm724, %v721, %v588
      %v740 = vsel %vm724, %v723, %v590
      %vm741 = vcmask 228352
      %v743 = vsel %vm741, %v726, %v604
      %v745 = vsel %vm741, %v728, %v606
      %v747 = vsel %vm741, %v730, %v608
      %v749 = vsel %vm741, %v732, %v610
      %v751 = vsel %vm741, %v734, %v612
      %v753 = vsel %vm741, %v736, %v614
      %v755 = vsel %vm741, %v738, %v616
      %v757 = vsel %vm741, %v740, %v618
      %vm758 = vcmask 261120
      %v760 = vsel %vm758, %v743, %v624
      %v762 = vsel %vm758, %v745, %v626
      %v764 = vsel %vm758, %v747, %v628
      %v766 = vsel %vm758, %v749, %v630
      %v768 = vsel %vm758, %v751, %v632
      %v770 = vsel %vm758, %v753, %v634
      %v772 = vsel %vm758, %v755, %v636
      %v774 = vsel %vm758, %v757, %v638
      %v776 = vlaneseq
      %v777 = vshrl.u32 %v776, 7
      %v778 = vsub.s32 0, %v777
      %v779 = vrot.slane %v275, %v778
      %v786 = vunpack.c.l.b16 %v265
      %v787 = vunpack.c.l.b16 %v266
      %v788 = vunpack.c.l.b16 %v267
      %v789 = vunpack.c.l.b16 %v268
      %v790 = vunpack.c.l.b16 %v269
      %v791 = vpack.c.b16 %v787, %v786
      %v792 = vpack.c.b16 %v789, %v788
      %v793 = vpack.c.b16 %v790, %v790
      %vm796 = vcmask 293888
      %v797 = vsel %vm796, %v760, 0
      %v799 = vsel %vm796, %v762, 0
      %v801 = vsel %vm796, %v764, 0
      %v803 = vsel %vm796, %v766, 0
      %v805 = vsel %vm796, %v768, 0
      %v807 = vsel %vm796, %v770, 0
      %v809 = vsel %vm796, %v772, 0
      %v811 = vsel %vm796, %v774, 0
      %vm813 = vcmask 1041408
      %v815 = vsel %vm813, %v793, 0
      %817 = vmatprep.subr.bf16.mxu0 0
      %818 = vmatpush1.bf16.msra.mxu0 %v791
      %819 = vmatprep.subr.bf16.mxu0 0
      %820 = vmatpush1.bf16.msra.mxu0 %v792
      %821 = vmatprep.subr.bf16.mxu0 0
      %822 = vmatpush1.bf16.msra.mxu0 %v815
      %823 = vmatprep.subr.bf16.mxu0 0
      %824 = vmatpush1.bf16.msra.mxu0 0
      %825 = vmatprep.subr.bf16.mxu0 0
      %826 = vmatpush1.bf16.msra.mxu0 0
      %827 = vmatprep.subr.bf16.mxu0 0
      %828 = vmatpush1.bf16.msra.mxu0 0
      %829 = vmatprep.subr.bf16.mxu0 0
      %830 = vmatpush1.bf16.msra.mxu0 0
      %831 = vmatprep.subr.bf16.mxu0 0
      %832 = vmatpush1.bf16.msra.mxu0 0
      %833 = vmatprep.subr.bf16.mxu0 0
      %834 = vmatpush1.bf16.msra.mxu0 0
      %835 = vmatprep.subr.bf16.mxu0 0
      %836 = vmatpush1.bf16.msra.mxu0 0
      %837 = vmatprep.subr.bf16.mxu0 0
      %838 = vmatpush1.bf16.msra.mxu0 0
      %839 = vmatprep.subr.bf16.mxu0 0
      %840 = vmatpush1.bf16.msra.mxu0 0
      %841 = vmatprep.subr.bf16.mxu0 0
      %842 = vmatpush1.bf16.msra.mxu0 0
      %843 = vmatprep.subr.bf16.mxu0 0
      %844 = vmatpush1.bf16.msra.mxu0 0
      %845 = vmatprep.subr.bf16.mxu0 0
      %846 = vmatpush1.bf16.msra.mxu0 0
      %847 = vmatprep.subr.bf16.mxu0 0
      %848 = vmatpush1.bf16.msra.mxu0 0
      %849 = vmatprep.mubr.bf16.mxu0 0
      %850 = vmatmul.mubr.bf16.gmra.mrb[0].mxu0 %v797
      %v851 = vpop.f32.mrb[0].mxu0
      %v852 = vadd.f32 %v779, %v851
      %v853 = vpop.f32.mrb[0].mxu0
      %v854 = vpop.f32.mrb[0].mxu0
      %v855 = vadd.f32 %v779, %v854
      %v856 = vpop.f32.mrb[0].mxu0
      %857 = vmatprep.mubr.bf16.mxu0 0
      %858 = vmatmul.mubr.bf16.gmra.mrb[0].mxu0 %v799
      %v859 = vpop.f32.mrb[0].mxu0
      %v860 = vadd.f32 %v779, %v859
      %v861 = vpop.f32.mrb[0].mxu0
      %v862 = vpop.f32.mrb[0].mxu0
      %v863 = vadd.f32 %v779, %v862
      %v864 = vpop.f32.mrb[0].mxu0
      %865 = vmatprep.mubr.bf16.mxu0 0
      %866 = vmatmul.mubr.bf16.gmra.mrb[0].mxu0 %v801
      %v867 = vpop.f32.mrb[0].mxu0
      %v868 = vadd.f32 %v779, %v867
      %v869 = vpop.f32.mrb[0].mxu0
      %v870 = vpop.f32.mrb[0].mxu0
      %v871 = vadd.f32 %v779, %v870
      %v872 = vpop.f32.mrb[0].mxu0
      %873 = vmatprep.mubr.bf16.mxu0 0
      %874 = vmatmul.mubr.bf16.gmra.mrb[0].mxu0 %v803
      %v875 = vpop.f32.mrb[0].mxu0
      %v876 = vadd.f32 %v779, %v875
      %v877 = vpop.f32.mrb[0].mxu0
      %v878 = vpop.f32.mrb[0].mxu0
      %v879 = vadd.f32 %v779, %v878
      %v880 = vpop.f32.mrb[0].mxu0
      %881 = vmatprep.mubr.bf16.mxu0 0
      %882 = vmatmul.mubr.bf16.gmra.mrb[0].mxu0 %v805
      %v883 = vpop.f32.mrb[0].mxu0
      %v884 = vadd.f32 %v779, %v883
      %v885 = vpop.f32.mrb[0].mxu0
      %v886 = vpop.f32.mrb[0].mxu0
      %v887 = vadd.f32 %v779, %v886
      %v888 = vpop.f32.mrb[0].mxu0
      %889 = vmatprep.mubr.bf16.mxu0 0
      %890 = vmatmul.mubr.bf16.gmra.mrb[0].mxu0 %v807
      %v891 = vpop.f32.mrb[0].mxu0
      %v892 = vadd.f32 %v779, %v891
      %v893 = vpop.f32.mrb[0].mxu0
      %v894 = vpop.f32.mrb[0].mxu0
      %v895 = vadd.f32 %v779, %v894
      %v896 = vpop.f32.mrb[0].mxu0
      %897 = vmatprep.mubr.bf16.mxu0 0
      %898 = vmatmul.mubr.bf16.gmra.mrb[0].mxu0 %v809
      %v899 = vpop.f32.mrb[0].mxu0
      %v900 = vadd.f32 %v779, %v899
      %v901 = vpop.f32.mrb[0].mxu0
      %v902 = vpop.f32.mrb[0].mxu0
      %v903 = vadd.f32 %v779, %v902
      %v904 = vpop.f32.mrb[0].mxu0
      %905 = vmatprep.mubr.bf16.mxu0 0
      %906 = vmatmul.mubr.bf16.gmra.mrb[0].mxu0 %v811
      %v907 = vpop.f32.mrb[0].mxu0
      %v908 = vadd.f32 %v779, %v907
      %v909 = vpop.f32.mrb[0].mxu0
      %v910 = vpop.f32.mrb[0].mxu0
      %v911 = vadd.f32 %v779, %v910
      %v912 = vpop.f32.mrb[0].mxu0
      %913 = vdwg.mxu0
      %v914 = vmax.f32 %v852, 0.0
      %v915 = vmax.f32 %v855, 0.0
      %v916 = vmax.f32 %v860, 0.0
      %v917 = vmax.f32 %v863, 0.0
      %v918 = vmax.f32 %v868, 0.0
      %v919 = vmax.f32 %v871, 0.0
      %v920 = vmax.f32 %v876, 0.0
      %v921 = vmax.f32 %v879, 0.0
      %v922 = vmax.f32 %v884, 0.0
      %v923 = vmax.f32 %v887, 0.0
      %v924 = vmax.f32 %v892, 0.0
      %v925 = vmax.f32 %v895, 0.0
      %v926 = vmax.f32 %v900, 0.0
      %v927 = vmax.f32 %v903, 0.0
      %v928 = vmax.f32 %v908, 0.0
      %v929 = vmax.f32 %v911, 0.0
      %v930 = vpack.c.bf16 %v915, %v914
      %v931 = vpack.c.bf16 %v917, %v916
      %v932 = vpack.c.bf16 %v919, %v918
      %v933 = vpack.c.bf16 %v921, %v920
      %v934 = vpack.c.bf16 %v923, %v922
      %v935 = vpack.c.bf16 %v925, %v924
      %v936 = vpack.c.bf16 %v927, %v926
      %v937 = vpack.c.bf16 %v929, %v928
      %v939 = vshrl.u32 %v930, 16
      %v941 = vrot.slane %v939, 7
      %v942 = vshll.u32 %v930, 16
      %v944 = vor.u32 %v941, %v942
      %v946 = vshrl.u32 %v931, 16
      %v948 = vrot.slane %v946, 7
      %v949 = vshll.u32 %v931, 16
      %v951 = vor.u32 %v948, %v949
      %v953 = vshrl.u32 %v932, 16
      %v955 = vrot.slane %v953, 7
      %v956 = vshll.u32 %v932, 16
      %v958 = vor.u32 %v955, %v956
      %v960 = vshrl.u32 %v933, 16
      %v962 = vrot.slane %v960, 7
      %v963 = vshll.u32 %v933, 16
      %v965 = vor.u32 %v962, %v963
      %v967 = vshrl.u32 %v934, 16
      %v969 = vrot.slane %v967, 7
      %v970 = vshll.u32 %v934, 16
      %v972 = vor.u32 %v969, %v970
      %v974 = vshrl.u32 %v935, 16
      %v976 = vrot.slane %v974, 7
      %v977 = vshll.u32 %v935, 16
      %v979 = vor.u32 %v976, %v977
      %v981 = vshrl.u32 %v936, 16
      %v983 = vrot.slane %v981, 7
      %v984 = vshll.u32 %v936, 16
      %v986 = vor.u32 %v983, %v984
      %v988 = vshrl.u32 %v937, 16
      %v990 = vrot.slane %v988, 7
      %v991 = vshll.u32 %v937, 16
      %v993 = vor.u32 %v990, %v991
      %s1010 = smul.u32 0, 2
      %s1011 = smul.addr %s1010, 8
      %s1012 = scalar_lea.vmem [#allocation2], %s1011
      %vm1013 = vcmask 31744
      %vm1014 = vsmask.f32 7938
      %vm1015 = vmand %vm1013, %vm1014
      %v1016 = vld [vmem:[%s1012] sm:$0xff]
      %v1017 = vsel %vm1015, %v944, %v1016
      %1018 = vst [vmem:[%s1012] sm:$0xff] %v1017
      %vm1019 = vcmask 24576
      %vm1020 = vsmask.f32 256
      %vm1021 = vmand %vm1019, %vm1020
      %v1022 = vld [vmem:[%s1012 + $0x8] sm:$0x1]
      %v1023 = vsel %vm1021, %v941, %v1022
      %1024 = vst [vmem:[%s1012 + $0x8] sm:$0x1] %v1023
      %v1025 = vld [vmem:[%s1012 + $0x10] sm:$0xff]
      %v1026 = vsel %vm1015, %v951, %v1025
      %1027 = vst [vmem:[%s1012 + $0x10] sm:$0xff] %v1026
      %v1028 = vld [vmem:[%s1012 + $0x18] sm:$0x1]
      %v1029 = vsel %vm1021, %v948, %v1028
      %1030 = vst [vmem:[%s1012 + $0x18] sm:$0x1] %v1029
      %v1031 = vld [vmem:[%s1012 + $0x20] sm:$0xff]
      %v1032 = vsel %vm1015, %v958, %v1031
      %1033 = vst [vmem:[%s1012 + $0x20] sm:$0xff] %v1032
      %v1034 = vld [vmem:[%s1012 + $0x28] sm:$0x1]
      %v1035 = vsel %vm1021, %v955, %v1034
      %1036 = vst [vmem:[%s1012 + $0x28] sm:$0x1] %v1035
      %v1037 = vld [vmem:[%s1012 + $0x30] sm:$0xff]
      %v1038 = vsel %vm1015, %v965, %v1037
      %1039 = vst [vmem:[%s1012 + $0x30] sm:$0xff] %v1038
      %v1040 = vld [vmem:[%s1012 + $0x38] sm:$0x1]
      %v1041 = vsel %vm1021, %v962, %v1040
      %1042 = vst [vmem:[%s1012 + $0x38] sm:$0x1] %v1041
      %v1043 = vld [vmem:[%s1012 + $0x40] sm:$0xff]
      %v1044 = vsel %vm1015, %v972, %v1043
      %1045 = vst [vmem:[%s1012 + $0x40] sm:$0xff] %v1044
      %v1046 = vld [vmem:[%s1012 + $0x48] sm:$0x1]
      %v1047 = vsel %vm1021, %v969, %v1046
      %1048 = vst [vmem:[%s1012 + $0x48] sm:$0x1] %v1047
      %v1049 = vld [vmem:[%s1012 + $0x50] sm:$0xff]
      %v1050 = vsel %vm1015, %v979, %v1049
      %1051 = vst [vmem:[%s1012 + $0x50] sm:$0xff] %v1050
      %v1052 = vld [vmem:[%s1012 + $0x58] sm:$0x1]
      %v1053 = vsel %vm1021, %v976, %v1052
      %1054 = vst [vmem:[%s1012 + $0x58] sm:$0x1] %v1053
      %v1055 = vld [vmem:[%s1012 + $0x60] sm:$0xff]
      %v1056 = vsel %vm1015, %v986, %v1055
      %1057 = vst [vmem:[%s1012 + $0x60] sm:$0xff] %v1056
      %v1058 = vld [vmem:[%s1012 + $0x68] sm:$0x1]
      %v1059 = vsel %vm1021, %v983, %v1058
      %1060 = vst [vmem:[%s1012 + $0x68] sm:$0x1] %v1059
      %v1061 = vld [vmem:[%s1012 + $0x70] sm:$0xff]
      %v1062 = vsel %vm1015, %v993, %v1061
      %1063 = vst [vmem:[%s1012 + $0x70] sm:$0xff] %v1062
      %v1064 = vld [vmem:[%s1012 + $0x78] sm:$0x1]
      %v1065 = vsel %vm1021, %v990, %v1064
      %1066 = vst [vmem:[%s1012 + $0x78] sm:$0x1] %v1065
      %s1067 = scalar_lea.vmem %s250, 256
      %v1068 = vld [vmem:[%s1067] sm:$0xff]
      %v1069 = vld [vmem:[%s1067 + $0x8] sm:$0xff]
      %v1070 = vld [vmem:[%s1067 + $0x10] sm:$0xff]
      %v1071 = vld [vmem:[%s1067 + $0x18] sm:$0xff]
      %v1072 = vld [vmem:[%s1067 + $0x20] sm:$0xff]
      %v1073 = vld [vmem:[%s1067 + $0x28] sm:$0xff]
      %v1074 = vld [vmem:[%s1067 + $0x30] sm:$0xff]
      %v1075 = vld [vmem:[%s1067 + $0x38] sm:$0xff]
      %v1076 = vld [vmem:[%s1067 + $0x40] sm:$0xff]
      %v1077 = vld [vmem:[%s1067 + $0x48] sm:$0xff]
      %v1078 = vld [vmem:[%s1067 + $0x50] sm:$0xff]
      %v1079 = vld [vmem:[%s1067 + $0x58] sm:$0xff]
      %v1080 = vld [vmem:[%s1067 + $0x60] sm:$0xff]
      %v1081 = vld [vmem:[%s1067 + $0x68] sm:$0xff]
      %v1082 = vld [vmem:[%s1067 + $0x70] sm:$0xff]
      %v1083 = vld [vmem:[%s1067 + $0x78] sm:$0xff]
      %v1084 = vpack.c.bf16 %v1069, %v1068
      %v1085 = vpack.c.bf16 %v1071, %v1070
      %v1086 = vpack.c.bf16 %v1073, %v1072
      %v1087 = vpack.c.bf16 %v1075, %v1074
      %v1088 = vpack.c.bf16 %v1077, %v1076
      %v1089 = vpack.c.bf16 %v1079, %v1078
      %v1090 = vpack.c.bf16 %v1081, %v1080
      %v1091 = vpack.c.bf16 %v1083, %v1082
      %v1093 = vshrl.u32 %v1084, 16
      %v1095 = vshll.u32 %v1084, 16
      %v1097 = vrot.slane %v1095, 1
      %v1098 = vor.u32 %v1093, %v1097
      %v1100 = vshll.u32 %v1085, 16
      %v1102 = vrot.slane %v1100, 1
      %v1103 = vsel %vm339, %v1098, %v1102
      %v1105 = vshrl.u32 %v1086, 16
      %v1107 = vshll.u32 %v1086, 16
      %v1109 = vrot.slane %v1107, 1
      %v1110 = vor.u32 %v1105, %v1109
      %v1112 = vshll.u32 %v1087, 16
      %v1114 = vrot.slane %v1112, 1
      %v1115 = vsel %vm339, %v1110, %v1114
      %1116 = vrot.lane.b32.xlu0 %v1103, 4
      %v1117 = vpop.permute.xlu0 %1116
      %1118 = vrot.lane.b32.xlu0 %v1115, 4
      %v1119 = vpop.permute.xlu0 %1118
      %v1124 = vrot.slane %v1084, 1
      %v1125 = vrot.slane %v1085, 1
      %v1126 = vsel %vm468, %v1124, %v1125
      %v1127 = vrot.slane %v1086, 1
      %v1128 = vrot.slane %v1087, 1
      %v1129 = vsel %vm468, %v1127, %v1128
      %1130 = vrot.lane.b32.xlu0 %v1126, 8
      %v1131 = vpop.permute.xlu0 %1130
      %1132 = vrot.lane.b32.xlu0 %v1129, 8
      %v1133 = vpop.permute.xlu0 %1132
      %1135 = vrot.lane.b32.xlu0 %v1086, 12
      %v1136 = vpop.permute.xlu0 %1135
      %1137 = vrot.lane.b32.xlu0 %v1088, 12
      %v1138 = vpop.permute.xlu0 %1137
      %v1140 = vshrl.u32 %v1088, 16
      %v1142 = vshll.u32 %v1088, 16
      %v1144 = vrot.slane %v1142, 1
      %v1145 = vor.u32 %v1140, %v1144
      %v1147 = vshll.u32 %v1089, 16
      %v1149 = vrot.slane %v1147, 1
      %v1150 = vsel %vm339, %v1145, %v1149
      %1151 = vrot.lane.b32.xlu0 %v1115, 16
      %v1152 = vpop.permute.xlu0 %1151
      %1153 = vrot.lane.b32.xlu0 %v1150, 16
      %v1154 = vpop.permute.xlu0 %1153
      %v1156 = vrot.slane %v1088, 1
      %v1157 = vrot.slane %v1089, 1
      %v1158 = vsel %vm468, %v1156, %v1157
      %1159 = vrot.lane.b32.xlu0 %v1129, 20
      %v1160 = vpop.permute.xlu0 %1159
      %1161 = vrot.lane.b32.xlu0 %v1158, 20
      %v1162 = vpop.permute.xlu0 %1161
      %1164 = vrot.lane.b32.xlu0 %v1088, 24
      %v1165 = vpop.permute.xlu0 %1164
      %1166 = vrot.lane.b32.xlu0 %v1090, 24
      %v1167 = vpop.permute.xlu0 %1166
      %v1169 = vshrl.u32 %v1090, 16
      %v1171 = vshll.u32 %v1090, 16
      %v1173 = vrot.slane %v1171, 1
      %v1174 = vor.u32 %v1169, %v1173
      %v1176 = vshll.u32 %v1091, 16
      %v1178 = vrot.slane %v1176, 1
      %v1179 = vsel %vm339, %v1174, %v1178
      %1180 = vrot.lane.b32.xlu0 %v1150, 28
      %v1181 = vpop.permute.xlu0 %1180
      %1182 = vrot.lane.b32.xlu0 %v1179, 28
      %v1183 = vpop.permute.xlu0 %1182
      %v1185 = vrot.slane %v1090, 1
      %v1186 = vrot.slane %v1091, 1
      %v1187 = vsel %vm468, %v1185, %v1186
      %1188 = vrot.lane.b32.xlu0 %v1158, 32
      %v1189 = vpop.permute.xlu0 %1188
      %1190 = vrot.lane.b32.xlu0 %v1187, 32
      %v1191 = vpop.permute.xlu0 %1190
      %v1193 = vsel %vm639, %v1084, %v1117
      %v1195 = vsel %vm639, %v1086, %v1119
      %v1197 = vsel %vm656, %v1193, %v1131
      %v1199 = vsel %vm656, %v1195, %v1133
      %v1201 = vsel %vm673, %v1197, %v1136
      %v1203 = vsel %vm673, %v1199, %v1138
      %v1205 = vsel %vm690, %v1201, %v1152
      %v1207 = vsel %vm690, %v1203, %v1154
      %v1209 = vsel %vm707, %v1205, %v1160
      %v1211 = vsel %vm707, %v1207, %v1162
      %v1213 = vsel %vm724, %v1209, %v1165
      %v1215 = vsel %vm724, %v1211, %v1167
      %v1217 = vsel %vm741, %v1213, %v1181
      %v1219 = vsel %vm741, %v1215, %v1183
      %v1221 = vsel %vm758, %v1217, %v1189
      %v1223 = vsel %vm758, %v1219, %v1191
      %v1224 = vsel %vm796, %v1221, 0
      %v1226 = vsel %vm796, %v1223, 0
      %1228 = vmatprep.subr.bf16.mxu0 0
      %1229 = vmatpush1.bf16.msra.mxu0 %v791
      %1230 = vmatprep.subr.bf16.mxu0 0
      %1231 = vmatpush1.bf16.msra.mxu0 %v792
      %1232 = vmatprep.subr.bf16.mxu0 0
      %1233 = vmatpush1.bf16.msra.mxu0 %v815
      %1234 = vmatprep.subr.bf16.mxu0 0
      %1235 = vmatpush1.bf16.msra.mxu0 0
      %1236 = vmatprep.subr.bf16.mxu0 0
      %1237 = vmatpush1.bf16.msra.mxu0 0
      %1238 = vmatprep.subr.bf16.mxu0 0
      %1239 = vmatpush1.bf16.msra.mxu0 0
      %1240 = vmatprep.subr.bf16.mxu0 0
      %1241 = vmatpush1.bf16.msra.mxu0 0
      %1242 = vmatprep.subr.bf16.mxu0 0
      %1243 = vmatpush1.bf16.msra.mxu0 0
      %1244 = vmatprep.subr.bf16.mxu0 0
      %1245 = vmatpush1.bf16.msra.mxu0 0
      %1246 = vmatprep.subr.bf16.mxu0 0
      %1247 = vmatpush1.bf16.msra.mxu0 0
      %1248 = vmatprep.subr.bf16.mxu0 0
      %1249 = vmatpush1.bf16.msra.mxu0 0
      %1250 = vmatprep.subr.bf16.mxu0 0
      %1251 = vmatpush1.bf16.msra.mxu0 0
      %1252 = vmatprep.subr.bf16.mxu0 0
      %1253 = vmatpush1.bf16.msra.mxu0 0
      %1254 = vmatprep.subr.bf16.mxu0 0
      %1255 = vmatpush1.bf16.msra.mxu0 0
      %1256 = vmatprep.subr.bf16.mxu0 0
      %1257 = vmatpush1.bf16.msra.mxu0 0
      %1258 = vmatprep.subr.bf16.mxu0 0
      %1259 = vmatpush1.bf16.msra.mxu0 0
      %1260 = vmatprep.mubr.bf16.mxu0 0
      %1261 = vmatmul.mubr.bf16.gmra.mrb[0].mxu0 %v1224
      %v1262 = vpop.f32.mrb[0].mxu0
      %v1263 = vadd.f32 %v779, %v1262
      %v1264 = vpop.f32.mrb[0].mxu0
      %v1265 = vpop.f32.mrb[0].mxu0
      %v1266 = vadd.f32 %v779, %v1265
      %v1267 = vpop.f32.mrb[0].mxu0
      %1268 = vmatprep.mubr.bf16.mxu0 0
      %1269 = vmatmul.mubr.bf16.gmra.mrb[0].mxu0 %v1226
      %v1270 = vpop.f32.mrb[0].mxu0
      %v1271 = vadd.f32 %v779, %v1270
      %v1272 = vpop.f32.mrb[0].mxu0
      %v1273 = vpop.f32.mrb[0].mxu0
      %v1274 = vadd.f32 %v779, %v1273
      %v1275 = vpop.f32.mrb[0].mxu0
      %1276 = vdwg.mxu0
      %v1277 = vmax.f32 %v1263, 0.0
      %v1278 = vmax.f32 %v1266, 0.0
      %v1279 = vmax.f32 %v1271, 0.0
      %v1280 = vmax.f32 %v1274, 0.0
      %v1281 = vpack.c.bf16 %v1278, %v1277
      %v1282 = vpack.c.bf16 %v1280, %v1279
      %v1284 = vshrl.u32 %v1281, 16
      %v1286 = vrot.slane %v1284, 7
      %v1287 = vshll.u32 %v1281, 16
      %v1289 = vor.u32 %v1286, %v1287
      %v1291 = vshrl.u32 %v1282, 16
      %v1293 = vrot.slane %v1291, 7
      %v1294 = vshll.u32 %v1282, 16
      %v1296 = vor.u32 %v1293, %v1294
      %s1301 = scalar_lea.vmem [#allocation2], 128
      %v1302 = vld [vmem:[%s1301] sm:$0xff]
      %v1303 = vsel %vm1015, %v1289, %v1302
      %1304 = vst [vmem:[%s1301] sm:$0xff] %v1303
      %v1305 = vld [vmem:[%s1301 + $0x8] sm:$0x1]
      %v1306 = vsel %vm1021, %v1286, %v1305
      %1307 = vst [vmem:[%s1301 + $0x8] sm:$0x1] %v1306
      %v1308 = vld [vmem:[%s1301 + $0x10] sm:$0xff]
      %v1309 = vsel %vm1015, %v1296, %v1308
      %1310 = vst [vmem:[%s1301 + $0x10] sm:$0xff] %v1309
      %v1311 = vld [vmem:[%s1301 + $0x18] sm:$0x1]
      %v1312 = vsel %vm1021, %v1293, %v1311
      %1313 = vst [vmem:[%s1301 + $0x18] sm:$0x1] %v1312
      %v1314 = vld [vmem:[#allocation2] sm:$0x1]
      %v1315 = vsel %vm1021, 0, %v1314
      %1316 = vst [vmem:[#allocation2] sm:$0x1] %v1315
      %v1317 = vld [vmem:[#allocation2 + $0x10] sm:$0x1]
      %v1318 = vsel %vm1021, 0, %v1317
      %1319 = vst [vmem:[#allocation2 + $0x10] sm:$0x1] %v1318
      %v1320 = vld [vmem:[#allocation2 + $0x20] sm:$0x1]
      %v1321 = vsel %vm1021, 0, %v1320
      %1322 = vst [vmem:[#allocation2 + $0x20] sm:$0x1] %v1321
      %v1323 = vld [vmem:[#allocation2 + $0x30] sm:$0x1]
      %v1324 = vsel %vm1021, 0, %v1323
      %1325 = vst [vmem:[#allocation2 + $0x30] sm:$0x1] %v1324
      %v1326 = vld [vmem:[#allocation2 + $0x40] sm:$0x1]
      %v1327 = vsel %vm1021, 0, %v1326
      %1328 = vst [vmem:[#allocation2 + $0x40] sm:$0x1] %v1327
      %v1329 = vld [vmem:[#allocation2 + $0x50] sm:$0x1]
      %v1330 = vsel %vm1021, 0, %v1329
      %1331 = vst [vmem:[#allocation2 + $0x50] sm:$0x1] %v1330
      %v1332 = vld [vmem:[#allocation2 + $0x60] sm:$0x1]
      %v1333 = vsel %vm1021, 0, %v1332
      %1334 = vst [vmem:[#allocation2 + $0x60] sm:$0x1] %v1333
      %v1335 = vld [vmem:[#allocation2 + $0x70] sm:$0x1]
      %v1336 = vsel %vm1021, 0, %v1335
      %1337 = vst [vmem:[#allocation2 + $0x70] sm:$0x1] %v1336
      %v1338 = vld [vmem:[#allocation2 + $0x80] sm:$0x1]
      %v1339 = vsel %vm1021, 0, %v1338
      %1340 = vst [vmem:[#allocation2 + $0x80] sm:$0x1] %v1339
      %v1341 = vld [vmem:[#allocation2 + $0x90] sm:$0x1]
      %v1342 = vsel %vm1021, 0, %v1341
      %1343 = vst [vmem:[#allocation2 + $0x90] sm:$0x1] %v1342
      %vm1344 = vmand %vm1019, %vm1014
      %v1345 = vld [vmem:[#allocation2 + $0x8] sm:$0x1]
      %v1346 = vsel %vm1344, 0, %v1345
      %1347 = vst [vmem:[#allocation2 + $0x8] sm:$0x1] %v1346
      %v1348 = vld [vmem:[#allocation2 + $0x18] sm:$0x1]
      %v1349 = vsel %vm1344, 0, %v1348
      %1350 = vst [vmem:[#allocation2 + $0x18] sm:$0x1] %v1349
      %v1351 = vld [vmem:[#allocation2 + $0x28] sm:$0x1]
      %v1352 = vsel %vm1344, 0, %v1351
      %1353 = vst [vmem:[#allocation2 + $0x28] sm:$0x1] %v1352
      %v1354 = vld [vmem:[#allocation2 + $0x38] sm:$0x1]
      %v1355 = vsel %vm1344, 0, %v1354
      %1356 = vst [vmem:[#allocation2 + $0x38] sm:$0x1] %v1355
      %v1357 = vld [vmem:[#allocation2 + $0x48] sm:$0x1]
      %v1358 = vsel %vm1344, 0, %v1357
      %1359 = vst [vmem:[#allocation2 + $0x48] sm:$0x1] %v1358
      %v1360 = vld [vmem:[#allocation2 + $0x58] sm:$0x1]
      %v1361 = vsel %vm1344, 0, %v1360
      %1362 = vst [vmem:[#allocation2 + $0x58] sm:$0x1] %v1361
      %v1363 = vld [vmem:[#allocation2 + $0x68] sm:$0x1]
      %v1364 = vsel %vm1344, 0, %v1363
      %1365 = vst [vmem:[#allocation2 + $0x68] sm:$0x1] %v1364
      %v1366 = vld [vmem:[#allocation2 + $0x78] sm:$0x1]
      %v1367 = vsel %vm1344, 0, %v1366
      %1368 = vst [vmem:[#allocation2 + $0x78] sm:$0x1] %v1367
      %v1369 = vld [vmem:[#allocation2 + $0x88] sm:$0x1]
      %v1370 = vsel %vm1344, 0, %v1369
      %1371 = vst [vmem:[#allocation2 + $0x88] sm:$0x1] %v1370
      %v1372 = vld [vmem:[#allocation2 + $0x98] sm:$0x1]
      %v1373 = vsel %vm1344, 0, %v1372
      %1374 = vst [vmem:[#allocation2 + $0x98] sm:$0x1] %v1373
      %p1375 = scmp.eq.s32.totalorder %s21, 0
      // Predicated region
      $region41: #{tpu_custom_call.1} parent=39 // pred_check
        %p1376 = pneg %p1375
      $region42: #{tpu_custom_call.1} parent=39 // pred_check_branch
        %1378 = sbr.rel (%p1376) target = $region44
      $region43: #{tpu_custom_call.1} parent=39 // pred_region
        %1379 = vst.msk [vmem:[#allocation2] sm:$0xff] %vm639, 0
        %1380 = vst.msk [vmem:[#allocation2 + $0x8] sm:$0xff] %vm639, 0
      $region44: #{tpu_custom_call.1} parent=39 // pred_fallthru
        _
      %s1381 = smul.u32 %s21, 8
      %s1382 = ssub.s32 17, %s1381
      %p1383 = scmp.ge.s32.totalorder %s1382, 0
      %p1384 = scmp.le.s32.totalorder %s1382, 9
      %p1385 = pnand %p1383, %p1384
      %p1386 = pneg %p1385
      // Predicated region
      $region45: #{tpu_custom_call.1} parent=39 // pred_check
        _
      $region46: #{tpu_custom_call.1} parent=39 // pred_check_branch
        %1388 = sbr.rel (%p1385) target = $region48
      $region47: #{tpu_custom_call.1} parent=39 // pred_region
        %p1389 = scmp.gt.s32.totalorder %s1382, 0
        %s1390 = scalar_select %p1389, %s1382, 0
        %p1391 = scmp.lt.s32.totalorder %s1390, 9
        %s1392 = scalar_select %p1391, %s1390, 9
        %s1393 = smul.u32 %s1392, 2
        %s1394 = smul.addr %s1393, 8
        %s1395 = scalar_lea.vmem [#allocation2], %s1394
        %1396 = vst.msk [vmem:[%s1395] sm:$0xff] %vm639, 0
        %1397 = vst.msk [vmem:[%s1395 + $0x8] sm:$0xff] %vm639, 0
      $region48: #{tpu_custom_call.1} parent=39 // pred_fallthru
        _
      %v1398 = vld [vmem:[%s1012] sm:$0xff]
      %v1399 = vld [vmem:[%s1012 + $0x8] sm:$0xff]
      %v1400 = vld [vmem:[%s1012 + $0x10] sm:$0xff]
      %v1401 = vld [vmem:[%s1012 + $0x18] sm:$0xff]
      %v1402 = vld [vmem:[%s1012 + $0x20] sm:$0xff]
      %v1403 = vld [vmem:[%s1012 + $0x28] sm:$0xff]
      %v1404 = vld [vmem:[%s1012 + $0x30] sm:$0xff]
      %v1405 = vld [vmem:[%s1012 + $0x38] sm:$0xff]
      %v1406 = vld [vmem:[%s1012 + $0x40] sm:$0xff]
      %v1407 = vld [vmem:[%s1012 + $0x48] sm:$0xff]
      %v1408 = vld [vmem:[%s1012 + $0x50] sm:$0xff]
      %v1409 = vld [vmem:[%s1012 + $0x58] sm:$0xff]
      %v1410 = vld [vmem:[%s1012 + $0x60] sm:$0xff]
      %v1411 = vld [vmem:[%s1012 + $0x68] sm:$0xff]
      %v1412 = vld [vmem:[%s1012 + $0x70] sm:$0xff]
      %v1413 = vld [vmem:[%s1012 + $0x78] sm:$0xff]
      %v1414 = vld [vmem:[%s1012 + $0x80] sm:$0xff]
      %v1415 = vld [vmem:[%s1012 + $0x88] sm:$0xff]
      %v1416 = vld [vmem:[%s1012 + $0x90] sm:$0xff]
      %v1417 = vld [vmem:[%s1012 + $0x98] sm:$0xff]
      %v1419 = vshrl.u32 %v1398, 16
      %v1421 = vshll.u32 %v1398, 16
      %v1423 = vrot.slane %v1421, 1
      %v1424 = vor.u32 %v1419, %v1423
      %v1426 = vshll.u32 %v1399, 16
      %v1428 = vrot.slane %v1426, 1
      %v1429 = vsel %vm339, %v1424, %v1428
      %v1431 = vshrl.u32 %v1400, 16
      %v1433 = vshll.u32 %v1400, 16
      %v1435 = vrot.slane %v1433, 1
      %v1436 = vor.u32 %v1431, %v1435
      %v1438 = vshll.u32 %v1401, 16
      %v1440 = vrot.slane %v1438, 1
      %v1441 = vsel %vm339, %v1436, %v1440
      %v1443 = vshrl.u32 %v1402, 16
      %v1445 = vshll.u32 %v1402, 16
      %v1447 = vrot.slane %v1445, 1
      %v1448 = vor.u32 %v1443, %v1447
      %v1450 = vshll.u32 %v1403, 16
      %v1452 = vrot.slane %v1450, 1
      %v1453 = vsel %vm339, %v1448, %v1452
      %v1455 = vshrl.u32 %v1404, 16
      %v1457 = vshll.u32 %v1404, 16
      %v1459 = vrot.slane %v1457, 1
      %v1460 = vor.u32 %v1455, %v1459
      %v1462 = vshll.u32 %v1405, 16
      %v1464 = vrot.slane %v1462, 1
      %v1465 = vsel %vm339, %v1460, %v1464
      %v1467 = vshrl.u32 %v1406, 16
      %v1469 = vshll.u32 %v1406, 16
      %v1471 = vrot.slane %v1469, 1
      %v1472 = vor.u32 %v1467, %v1471
      %v1474 = vshll.u32 %v1407, 16
      %v1476 = vrot.slane %v1474, 1
      %v1477 = vsel %vm339, %v1472, %v1476
      %v1479 = vshrl.u32 %v1408, 16
      %v1481 = vshll.u32 %v1408, 16
      %v1483 = vrot.slane %v1481, 1
      %v1484 = vor.u32 %v1479, %v1483
      %v1486 = vshll.u32 %v1409, 16
      %v1488 = vrot.slane %v1486, 1
      %v1489 = vsel %vm339, %v1484, %v1488
      %v1491 = vshrl.u32 %v1410, 16
      %v1493 = vshll.u32 %v1410, 16
      %v1495 = vrot.slane %v1493, 1
      %v1496 = vor.u32 %v1491, %v1495
      %v1498 = vshll.u32 %v1411, 16
      %v1500 = vrot.slane %v1498, 1
      %v1501 = vsel %vm339, %v1496, %v1500
      %v1503 = vshrl.u32 %v1412, 16
      %v1505 = vshll.u32 %v1412, 16
      %v1507 = vrot.slane %v1505, 1
      %v1508 = vor.u32 %v1503, %v1507
      %v1510 = vshll.u32 %v1413, 16
      %v1512 = vrot.slane %v1510, 1
      %v1513 = vsel %vm339, %v1508, %v1512
      %1514 = vrot.lane.b32.xlu0 %v1429, 4
      %v1515 = vpop.permute.xlu0 %1514
      %1516 = vrot.lane.b32.xlu0 %v1441, 4
      %v1517 = vpop.permute.xlu0 %1516
      %1518 = vrot.lane.b32.xlu0 %v1453, 4
      %v1519 = vpop.permute.xlu0 %1518
      %1520 = vrot.lane.b32.xlu0 %v1465, 4
      %v1521 = vpop.permute.xlu0 %1520
      %1522 = vrot.lane.b32.xlu0 %v1477, 4
      %v1523 = vpop.permute.xlu0 %1522
      %1524 = vrot.lane.b32.xlu0 %v1489, 4
      %v1525 = vpop.permute.xlu0 %1524
      %1526 = vrot.lane.b32.xlu0 %v1501, 4
      %v1527 = vpop.permute.xlu0 %1526
      %1528 = vrot.lane.b32.xlu0 %v1513, 4
      %v1529 = vpop.permute.xlu0 %1528
      %v1546 = vrot.slane %v1398, 1
      %v1547 = vrot.slane %v1399, 1
      %v1548 = vsel %vm468, %v1546, %v1547
      %v1549 = vrot.slane %v1400, 1
      %v1550 = vrot.slane %v1401, 1
      %v1551 = vsel %vm468, %v1549, %v1550
      %v1552 = vrot.slane %v1402, 1
      %v1553 = vrot.slane %v1403, 1
      %v1554 = vsel %vm468, %v1552, %v1553
      %v1555 = vrot.slane %v1404, 1
      %v1556 = vrot.slane %v1405, 1
      %v1557 = vsel %vm468, %v1555, %v1556
      %v1558 = vrot.slane %v1406, 1
      %v1559 = vrot.slane %v1407, 1
      %v1560 = vsel %vm468, %v1558, %v1559
      %v1561 = vrot.slane %v1408, 1
      %v1562 = vrot.slane %v1409, 1
      %v1563 = vsel %vm468, %v1561, %v1562
      %v1564 = vrot.slane %v1410, 1
      %v1565 = vrot.slane %v1411, 1
      %v1566 = vsel %vm468, %v1564, %v1565
      %v1567 = vrot.slane %v1412, 1
      %v1568 = vrot.slane %v1413, 1
      %v1569 = vsel %vm468, %v1567, %v1568
      %1570 = vrot.lane.b32.xlu0 %v1548, 8
      %v1571 = vpop.permute.xlu0 %1570
      %1572 = vrot.lane.b32.xlu0 %v1551, 8
      %v1573 = vpop.permute.xlu0 %1572
      %1574 = vrot.lane.b32.xlu0 %v1554, 8
      %v1575 = vpop.permute.xlu0 %1574
      %1576 = vrot.lane.b32.xlu0 %v1557, 8
      %v1577 = vpop.permute.xlu0 %1576
      %1578 = vrot.lane.b32.xlu0 %v1560, 8
      %v1579 = vpop.permute.xlu0 %1578
      %1580 = vrot.lane.b32.xlu0 %v1563, 8
      %v1581 = vpop.permute.xlu0 %1580
      %1582 = vrot.lane.b32.xlu0 %v1566, 8
      %v1583 = vpop.permute.xlu0 %1582
      %1584 = vrot.lane.b32.xlu0 %v1569, 8
      %v1585 = vpop.permute.xlu0 %1584
      %1587 = vrot.lane.b32.xlu0 %v1400, 12
      %v1588 = vpop.permute.xlu0 %1587
      %1589 = vrot.lane.b32.xlu0 %v1402, 12
      %v1590 = vpop.permute.xlu0 %1589
      %1591 = vrot.lane.b32.xlu0 %v1404, 12
      %v1592 = vpop.permute.xlu0 %1591
      %1593 = vrot.lane.b32.xlu0 %v1406, 12
      %v1594 = vpop.permute.xlu0 %1593
      %1595 = vrot.lane.b32.xlu0 %v1408, 12
      %v1596 = vpop.permute.xlu0 %1595
      %1597 = vrot.lane.b32.xlu0 %v1410, 12
      %v1598 = vpop.permute.xlu0 %1597
      %1599 = vrot.lane.b32.xlu0 %v1412, 12
      %v1600 = vpop.permute.xlu0 %1599
      %1601 = vrot.lane.b32.xlu0 %v1414, 12
      %v1602 = vpop.permute.xlu0 %1601
      %v1604 = vshrl.u32 %v1414, 16
      %v1606 = vshll.u32 %v1414, 16
      %v1608 = vrot.slane %v1606, 1
      %v1609 = vor.u32 %v1604, %v1608
      %v1611 = vshll.u32 %v1415, 16
      %v1613 = vrot.slane %v1611, 1
      %v1614 = vsel %vm339, %v1609, %v1613
      %1615 = vrot.lane.b32.xlu0 %v1441, 16
      %v1616 = vpop.permute.xlu0 %1615
      %1617 = vrot.lane.b32.xlu0 %v1453, 16
      %v1618 = vpop.permute.xlu0 %1617
      %1619 = vrot.lane.b32.xlu0 %v1465, 16
      %v1620 = vpop.permute.xlu0 %1619
      %1621 = vrot.lane.b32.xlu0 %v1477, 16
      %v1622 = vpop.permute.xlu0 %1621
      %1623 = vrot.lane.b32.xlu0 %v1489, 16
      %v1624 = vpop.permute.xlu0 %1623
      %1625 = vrot.lane.b32.xlu0 %v1501, 16
      %v1626 = vpop.permute.xlu0 %1625
      %1627 = vrot.lane.b32.xlu0 %v1513, 16
      %v1628 = vpop.permute.xlu0 %1627
      %1629 = vrot.lane.b32.xlu0 %v1614, 16
      %v1630 = vpop.permute.xlu0 %1629
      %v1632 = vrot.slane %v1414, 1
      %v1633 = vrot.slane %v1415, 1
      %v1634 = vsel %vm468, %v1632, %v1633
      %1635 = vrot.lane.b32.xlu0 %v1551, 20
      %v1636 = vpop.permute.xlu0 %1635
      %1637 = vrot.lane.b32.xlu0 %v1554, 20
      %v1638 = vpop.permute.xlu0 %1637
      %1639 = vrot.lane.b32.xlu0 %v1557, 20
      %v1640 = vpop.permute.xlu0 %1639
      %1641 = vrot.lane.b32.xlu0 %v1560, 20
      %v1642 = vpop.permute.xlu0 %1641
      %1643 = vrot.lane.b32.xlu0 %v1563, 20
      %v1644 = vpop.permute.xlu0 %1643
      %1645 = vrot.lane.b32.xlu0 %v1566, 20
      %v1646 = vpop.permute.xlu0 %1645
      %1647 = vrot.lane.b32.xlu0 %v1569, 20
      %v1648 = vpop.permute.xlu0 %1647
      %1649 = vrot.lane.b32.xlu0 %v1634, 20
      %v1650 = vpop.permute.xlu0 %1649
      %1652 = vrot.lane.b32.xlu0 %v1402, 24
      %v1653 = vpop.permute.xlu0 %1652
      %1654 = vrot.lane.b32.xlu0 %v1404, 24
      %v1655 = vpop.permute.xlu0 %1654
      %1656 = vrot.lane.b32.xlu0 %v1406, 24
      %v1657 = vpop.permute.xlu0 %1656
      %1658 = vrot.lane.b32.xlu0 %v1408, 24
      %v1659 = vpop.permute.xlu0 %1658
      %1660 = vrot.lane.b32.xlu0 %v1410, 24
      %v1661 = vpop.permute.xlu0 %1660
      %1662 = vrot.lane.b32.xlu0 %v1412, 24
      %v1663 = vpop.permute.xlu0 %1662
      %1664 = vrot.lane.b32.xlu0 %v1414, 24
      %v1665 = vpop.permute.xlu0 %1664
      %1666 = vrot.lane.b32.xlu0 %v1416, 24
      %v1667 = vpop.permute.xlu0 %1666
      %v1669 = vshrl.u32 %v1416, 16
      %v1671 = vshll.u32 %v1416, 16
      %v1673 = vrot.slane %v1671, 1
      %v1674 = vor.u32 %v1669, %v1673
      %v1676 = vshll.u32 %v1417, 16
      %v1678 = vrot.slane %v1676, 1
      %v1679 = vsel %vm339, %v1674, %v1678
      %1680 = vrot.lane.b32.xlu0 %v1453, 28
      %v1681 = vpop.permute.xlu0 %1680
      %1682 = vrot.lane.b32.xlu0 %v1465, 28
      %v1683 = vpop.permute.xlu0 %1682
      %1684 = vrot.lane.b32.xlu0 %v1477, 28
      %v1685 = vpop.permute.xlu0 %1684
      %1686 = vrot.lane.b32.xlu0 %v1489, 28
      %v1687 = vpop.permute.xlu0 %1686
      %1688 = vrot.lane.b32.xlu0 %v1501, 28
      %v1689 = vpop.permute.xlu0 %1688
      %1690 = vrot.lane.b32.xlu0 %v1513, 28
      %v1691 = vpop.permute.xlu0 %1690
      %1692 = vrot.lane.b32.xlu0 %v1614, 28
      %v1693 = vpop.permute.xlu0 %1692
      %1694 = vrot.lane.b32.xlu0 %v1679, 28
      %v1695 = vpop.permute.xlu0 %1694
      %v1697 = vrot.slane %v1416, 1
      %v1698 = vrot.slane %v1417, 1
      %v1699 = vsel %vm468, %v1697, %v1698
      %1700 = vrot.lane.b32.xlu0 %v1554, 32
      %v1701 = vpop.permute.xlu0 %1700
      %1702 = vrot.lane.b32.xlu0 %v1557, 32
      %v1703 = vpop.permute.xlu0 %1702
      %1704 = vrot.lane.b32.xlu0 %v1560, 32
      %v1705 = vpop.permute.xlu0 %1704
      %1706 = vrot.lane.b32.xlu0 %v1563, 32
      %v1707 = vpop.permute.xlu0 %1706
      %1708 = vrot.lane.b32.xlu0 %v1566, 32
      %v1709 = vpop.permute.xlu0 %1708
      %1710 = vrot.lane.b32.xlu0 %v1569, 32
      %v1711 = vpop.permute.xlu0 %1710
      %1712 = vrot.lane.b32.xlu0 %v1634, 32
      %v1713 = vpop.permute.xlu0 %1712
      %1714 = vrot.lane.b32.xlu0 %v1699, 32
      %v1715 = vpop.permute.xlu0 %1714
      %v1717 = vsel %vm639, %v1398, %v1515
      %v1719 = vsel %vm639, %v1400, %v1517
      %v1721 = vsel %vm639, %v1402, %v1519
      %v1723 = vsel %vm639, %v1404, %v1521
      %v1725 = vsel %vm639, %v1406, %v1523
      %v1727 = vsel %vm639, %v1408, %v1525
      %v1729 = vsel %vm639, %v1410, %v1527
      %v1731 = vsel %vm639, %v1412, %v1529
      %v1733 = vsel %vm656, %v1717, %v1571
      %v1735 = vsel %vm656, %v1719, %v1573
      %v1737 = vsel %vm656, %v1721, %v1575
      %v1739 = vsel %vm656, %v1723, %v1577
      %v1741 = vsel %vm656, %v1725, %v1579
      %v1743 = vsel %vm656, %v1727, %v1581
      %v1745 = vsel %vm656, %v1729, %v1583
      %v1747 = vsel %vm656, %v1731, %v1585
      %v1749 = vsel %vm673, %v1733, %v1588
      %v1751 = vsel %vm673, %v1735, %v1590
      %v1753 = vsel %vm673, %v1737, %v1592
      %v1755 = vsel %vm673, %v1739, %v1594
      %v1757 = vsel %vm673, %v1741, %v1596
      %v1759 = vsel %vm673, %v1743, %v1598
      %v1761 = vsel %vm673, %v1745, %v1600
      %v1763 = vsel %vm673, %v1747, %v1602
      %v1765 = vsel %vm690, %v1749, %v1616
      %v1767 = vsel %vm690, %v1751, %v1618
      %v1769 = vsel %vm690, %v1753, %v1620
      %v1771 = vsel %vm690, %v1755, %v1622
      %v1773 = vsel %vm690, %v1757, %v1624
      %v1775 = vsel %vm690, %v1759, %v1626
      %v1777 = vsel %vm690, %v1761, %v1628
      %v1779 = vsel %vm690, %v1763, %v1630
      %v1781 = vsel %vm707, %v1765, %v1636
      %v1783 = vsel %vm707, %v1767, %v1638
      %v1785 = vsel %vm707, %v1769, %v1640
      %v1787 = vsel %vm707, %v1771, %v1642
      %v1789 = vsel %vm707, %v1773, %v1644
      %v1791 = vsel %vm707, %v1775, %v1646
      %v1793 = vsel %vm707, %v1777, %v1648
      %v1795 = vsel %vm707, %v1779, %v1650
      %v1797 = vsel %vm724, %v1781, %v1653
      %v1799 = vsel %vm724, %v1783, %v1655
      %v1801 = vsel %vm724, %v1785, %v1657
      %v1803 = vsel %vm724, %v1787, %v1659
      %v1805 = vsel %vm724, %v1789, %v1661
      %v1807 = vsel %vm724, %v1791, %v1663
      %v1809 = vsel %vm724, %v1793, %v1665
      %v1811 = vsel %vm724, %v1795, %v1667
      %v1813 = vsel %vm741, %v1797, %v1681
      %v1815 = vsel %vm741, %v1799, %v1683
      %v1817 = vsel %vm741, %v1801, %v1685
      %v1819 = vsel %vm741, %v1803, %v1687
      %v1821 = vsel %vm741, %v1805, %v1689
      %v1823 = vsel %vm741, %v1807, %v1691
      %v1825 = vsel %vm741, %v1809, %v1693
      %v1827 = vsel %vm741, %v1811, %v1695
      %v1829 = vsel %vm758, %v1813, %v1701
      %v1831 = vsel %vm758, %v1815, %v1703
      %v1833 = vsel %vm758, %v1817, %v1705
      %v1835 = vsel %vm758, %v1819, %v1707
      %v1837 = vsel %vm758, %v1821, %v1709
      %v1839 = vsel %vm758, %v1823, %v1711
      %v1841 = vsel %vm758, %v1825, %v1713
      %v1843 = vsel %vm758, %v1827, %v1715
      %v1845 = vlaneseq
      %v1846 = vshrl.u32 %v1845, 7
      %v1847 = vsub.s32 0, %v1846
      %v1848 = vrot.slane %v276, %v1847
      %v1855 = vunpack.c.l.b16 %v270
      %v1856 = vunpack.c.l.b16 %v271
      %v1857 = vunpack.c.l.b16 %v272
      %v1858 = vunpack.c.l.b16 %v273
      %v1859 = vunpack.c.l.b16 %v274
      %v1860 = vpack.c.b16 %v1856, %v1855
      %v1861 = vpack.c.b16 %v1858, %v1857
      %v1862 = vpack.c.b16 %v1859, %v1859
      %v1865 = vsel %vm796, %v1829, 0
      %v1867 = vsel %vm796, %v1831, 0
      %v1869 = vsel %vm796, %v1833, 0
      %v1871 = vsel %vm796, %v1835, 0
      %v1873 = vsel %vm796, %v1837, 0
      %v1875 = vsel %vm796, %v1839, 0
      %v1877 = vsel %vm796, %v1841, 0
      %v1879 = vsel %vm796, %v1843, 0
      %v1882 = vsel %vm813, %v1862, 0
      %1884 = vmatprep.subr.bf16.mxu0 0
      %1885 = vmatpush1.bf16.msra.mxu0 %v1860
      %1886 = vmatprep.subr.bf16.mxu0 0
      %1887 = vmatpush1.bf16.msra.mxu0 %v1861
      %1888 = vmatprep.subr.bf16.mxu0 0
      %1889 = vmatpush1.bf16.msra.mxu0 %v1882
      %1890 = vmatprep.subr.bf16.mxu0 0
      %1891 = vmatpush1.bf16.msra.mxu0 0
      %1892 = vmatprep.subr.bf16.mxu0 0
      %1893 = vmatpush1.bf16.msra.mxu0 0
      %1894 = vmatprep.subr.bf16.mxu0 0
      %1895 = vmatpush1.bf16.msra.mxu0 0
      %1896 = vmatprep.subr.bf16.mxu0 0
      %1897 = vmatpush1.bf16.msra.mxu0 0
      %1898 = vmatprep.subr.bf16.mxu0 0
      %1899 = vmatpush1.bf16.msra.mxu0 0
      %1900 = vmatprep.subr.bf16.mxu0 0
      %1901 = vmatpush1.bf16.msra.mxu0 0
      %1902 = vmatprep.subr.bf16.mxu0 0
      %1903 = vmatpush1.bf16.msra.mxu0 0
      %1904 = vmatprep.subr.bf16.mxu0 0
      %1905 = vmatpush1.bf16.msra.mxu0 0
      %1906 = vmatprep.subr.bf16.mxu0 0
      %1907 = vmatpush1.bf16.msra.mxu0 0
      %1908 = vmatprep.subr.bf16.mxu0 0
      %1909 = vmatpush1.bf16.msra.mxu0 0
      %1910 = vmatprep.subr.bf16.mxu0 0
      %1911 = vmatpush1.bf16.msra.mxu0 0
      %1912 = vmatprep.subr.bf16.mxu0 0
      %1913 = vmatpush1.bf16.msra.mxu0 0
      %1914 = vmatprep.subr.bf16.mxu0 0
      %1915 = vmatpush1.bf16.msra.mxu0 0
      %1916 = vmatprep.mubr.bf16.mxu0 0
      %1917 = vmatmul.mubr.bf16.gmra.mrb[0].mxu0 %v1865
      %v1918 = vpop.f32.mrb[0].mxu0
      %v1919 = vadd.f32 %v1848, %v1918
      %v1920 = vpop.f32.mrb[0].mxu0
      %v1921 = vpop.f32.mrb[0].mxu0
      %v1922 = vadd.f32 %v1848, %v1921
      %v1923 = vpop.f32.mrb[0].mxu0
      %1924 = vmatprep.mubr.bf16.mxu0 0
      %1925 = vmatmul.mubr.bf16.gmra.mrb[0].mxu0 %v1867
      %v1926 = vpop.f32.mrb[0].mxu0
      %v1927 = vadd.f32 %v1848, %v1926
      %v1928 = vpop.f32.mrb[0].mxu0
      %v1929 = vpop.f32.mrb[0].mxu0
      %v1930 = vadd.f32 %v1848, %v1929
      %v1931 = vpop.f32.mrb[0].mxu0
      %1932 = vmatprep.mubr.bf16.mxu0 0
      %1933 = vmatmul.mubr.bf16.gmra.mrb[0].mxu0 %v1869
      %v1934 = vpop.f32.mrb[0].mxu0
      %v1935 = vadd.f32 %v1848, %v1934
      %v1936 = vpop.f32.mrb[0].mxu0
      %v1937 = vpop.f32.mrb[0].mxu0
      %v1938 = vadd.f32 %v1848, %v1937
      %v1939 = vpop.f32.mrb[0].mxu0
      %1940 = vmatprep.mubr.bf16.mxu0 0
      %1941 = vmatmul.mubr.bf16.gmra.mrb[0].mxu0 %v1871
      %v1942 = vpop.f32.mrb[0].mxu0
      %v1943 = vadd.f32 %v1848, %v1942
      %v1944 = vpop.f32.mrb[0].mxu0
      %v1945 = vpop.f32.mrb[0].mxu0
      %v1946 = vadd.f32 %v1848, %v1945
      %v1947 = vpop.f32.mrb[0].mxu0
      %1948 = vmatprep.mubr.bf16.mxu0 0
      %1949 = vmatmul.mubr.bf16.gmra.mrb[0].mxu0 %v1873
      %v1950 = vpop.f32.mrb[0].mxu0
      %v1951 = vadd.f32 %v1848, %v1950
      %v1952 = vpop.f32.mrb[0].mxu0
      %v1953 = vpop.f32.mrb[0].mxu0
      %v1954 = vadd.f32 %v1848, %v1953
      %v1955 = vpop.f32.mrb[0].mxu0
      %1956 = vmatprep.mubr.bf16.mxu0 0
      %1957 = vmatmul.mubr.bf16.gmra.mrb[0].mxu0 %v1875
      %v1958 = vpop.f32.mrb[0].mxu0
      %v1959 = vadd.f32 %v1848, %v1958
      %v1960 = vpop.f32.mrb[0].mxu0
      %v1961 = vpop.f32.mrb[0].mxu0
      %v1962 = vadd.f32 %v1848, %v1961
      %v1963 = vpop.f32.mrb[0].mxu0
      %1964 = vmatprep.mubr.bf16.mxu0 0
      %1965 = vmatmul.mubr.bf16.gmra.mrb[0].mxu0 %v1877
      %v1966 = vpop.f32.mrb[0].mxu0
      %v1967 = vadd.f32 %v1848, %v1966
      %v1968 = vpop.f32.mrb[0].mxu0
      %v1969 = vpop.f32.mrb[0].mxu0
      %v1970 = vadd.f32 %v1848, %v1969
      %v1971 = vpop.f32.mrb[0].mxu0
      %1972 = vmatprep.mubr.bf16.mxu0 0
      %1973 = vmatmul.mubr.bf16.gmra.mrb[0].mxu0 %v1879
      %v1974 = vpop.f32.mrb[0].mxu0
      %v1975 = vadd.f32 %v1848, %v1974
      %v1976 = vpop.f32.mrb[0].mxu0
      %v1977 = vpop.f32.mrb[0].mxu0
      %v1978 = vadd.f32 %v1848, %v1977
      %v1979 = vpop.f32.mrb[0].mxu0
      %1980 = vdwg.mxu0
      %s1981 = sadd.s32 0, 2
      %s1982 = smul.u32 %s1981, 32
      %s1983 = scalar_lea.vmem %s250, %s1982
      %v1984 = vld [vmem:[%s1983 + $0x1] sm:$0xff]
      %v1985 = vld [vmem:[%s1983 + $0x9] sm:$0xff]
      %v1986 = vld [vmem:[%s1983 + $0x21] sm:$0xff]
      %v1987 = vld [vmem:[%s1983 + $0x29] sm:$0xff]
      %v1988 = vld [vmem:[%s1983 + $0x41] sm:$0xff]
      %v1989 = vld [vmem:[%s1983 + $0x49] sm:$0xff]
      %v1990 = vld [vmem:[%s1983 + $0x61] sm:$0xff]
      %v1991 = vld [vmem:[%s1983 + $0x69] sm:$0xff]
      %v1992 = vld [vmem:[%s1983 + $0x81] sm:$0xff]
      %v1993 = vld [vmem:[%s1983 + $0x89] sm:$0xff]
      %v1994 = vld [vmem:[%s1983 + $0xa1] sm:$0xff]
      %v1995 = vld [vmem:[%s1983 + $0xa9] sm:$0xff]
      %v1996 = vld [vmem:[%s1983 + $0xc1] sm:$0xff]
      %v1997 = vld [vmem:[%s1983 + $0xc9] sm:$0xff]
      %v1998 = vld [vmem:[%s1983 + $0xe1] sm:$0xff]
      %v1999 = vld [vmem:[%s1983 + $0xe9] sm:$0xff]
      %v2000 = vadd.f32 %v1984, %v1919
      %v2001 = vadd.f32 %v1985, %v1922
      %v2002 = vadd.f32 %v1986, %v1927
      %v2003 = vadd.f32 %v1987, %v1930
      %v2004 = vadd.f32 %v1988, %v1935
      %v2005 = vadd.f32 %v1989, %v1938
      %v2006 = vadd.f32 %v1990, %v1943
      %v2007 = vadd.f32 %v1991, %v1946
      %v2008 = vadd.f32 %v1992, %v1951
      %v2009 = vadd.f32 %v1993, %v1954
      %v2010 = vadd.f32 %v1994, %v1959
      %v2011 = vadd.f32 %v1995, %v1962
      %v2012 = vadd.f32 %v1996, %v1967
      %v2013 = vadd.f32 %v1997, %v1970
      %v2014 = vadd.f32 %v1998, %v1975
      %v2015 = vadd.f32 %v1999, %v1978
      %s2016 = smul.u32 0, 16
      %s2017 = scalar_lea.vmem %s262, %s2016
      %2018 = vst.msk [vmem:[%s2017] sm:$0xff] %vm639, %v2000
      %2019 = vst.msk [vmem:[%s2017 + $0x8] sm:$0xff] %vm639, %v2001
      %2020 = vst.msk [vmem:[%s2017 + $0x10] sm:$0xff] %vm639, %v2002
      %2021 = vst.msk [vmem:[%s2017 + $0x18] sm:$0xff] %vm639, %v2003
      %2022 = vst.msk [vmem:[%s2017 + $0x20] sm:$0xff] %vm639, %v2004
      %2023 = vst.msk [vmem:[%s2017 + $0x28] sm:$0xff] %vm639, %v2005
      %2024 = vst.msk [vmem:[%s2017 + $0x30] sm:$0xff] %vm639, %v2006
      %2025 = vst.msk [vmem:[%s2017 + $0x38] sm:$0xff] %vm639, %v2007
      %2026 = vst.msk [vmem:[%s2017 + $0x40] sm:$0xff] %vm639, %v2008
      %2027 = vst.msk [vmem:[%s2017 + $0x48] sm:$0xff] %vm639, %v2009
      %2028 = vst.msk [vmem:[%s2017 + $0x50] sm:$0xff] %vm639, %v2010
      %2029 = vst.msk [vmem:[%s2017 + $0x58] sm:$0xff] %vm639, %v2011
      %2030 = vst.msk [vmem:[%s2017 + $0x60] sm:$0xff] %vm639, %v2012
      %2031 = vst.msk [vmem:[%s2017 + $0x68] sm:$0xff] %vm639, %v2013
      %2032 = vst.msk [vmem:[%s2017 + $0x70] sm:$0xff] %vm639, %v2014
      %2033 = vst.msk [vmem:[%s2017 + $0x78] sm:$0xff] %vm639, %v2015
      %s2034 = smul.u32 8, %s21
      %p2035 = scmp.lt.s32.totalorder %s20, 1
      %s2036 = scalar_select %p2035, %s20, 1
      %p2037 = scmp.lt.s32.totalorder %s2034, 15
      %s2038 = scalar_select %p2037, %s2034, 15
      %s2039 = smul.addr %s2038, 2
      %s2040 = smul.addr %s2036, 32
      %s2041 = sadd.s32 %s2039, %s2040
      %s2042 = smul.addr %s2041, 8
      %s2043 = scalar_lea.vmem %s5, %s2042
      // Predicated region
      $region49: #{tpu_custom_call.1} parent=39 // pred_check
        %p2044 = pneg %p162
      $region50: #{tpu_custom_call.1} parent=39 // pred_check_branch
        %2046 = sbr.rel (%p2044) target = $region52
      $region51: #{tpu_custom_call.1} parent=39 // pred_region
        %s2047 = smul.u32 8, %s21
      $region52: #{tpu_custom_call.1} parent=39 // pred_fallthru
        _
    $region40: #{tpu_custom_call.1} parent=5 // pred_fallthru
      _
    %p2048 = scmp.le.s32.totalorder 2, %s11
    // Predicated region
    $region53: #{tpu_custom_call.1} parent=5 // pred_check
      %p2049 = pneg %p2048
    $region54: #{tpu_custom_call.1} parent=5 // pred_check_branch
      %2051 = sbr.rel (%p2049) target = $region56
    $region55: #{tpu_custom_call.1} parent=5 // pred_region
      %s2052 = ssub.s32 %s11, 2
      // Predicated region
      $region57: #{tpu_custom_call.1} parent=55 // pred_check
        %p2053 = pneg %p168
      $region58: #{tpu_custom_call.1} parent=55 // pred_check_branch
        %2055 = sbr.rel (%p2053) target = $region60
      $region59: #{tpu_custom_call.1} parent=55 // pred_region
        %s2056 = smul.u32 8, %s23
        %p2057 = scmp.lt.s32.totalorder %s22, 1
        %s2058 = scalar_select %p2057, %s22, 1
        %p2059 = scmp.lt.s32.totalorder %s2056, 15
        %s2060 = scalar_select %p2059, %s2056, 15
        %s2061 = smul.addr %s2060, 2
        %s2062 = smul.addr %s2058, 32
        %s2063 = sadd.s32 %s2061, %s2062
        %s2064 = smul.addr %s2063, 8
        %s2065 = scalar_lea.vmem %s5, %s2064
      $region60: #{tpu_custom_call.1} parent=55 // pred_fallthru
        _
    $region56: #{tpu_custom_call.1} parent=5 // pred_fallthru
      _
  $region6: #{tpu_custom_call.1} parent=0 // loop_footer
    %s15 = sadd.s32 1, %s11
  $region7: #{tpu_custom_call.1} parent=0 // loop_footer_branch
    %10 = sbr.rel target = $region3
  $region8: #{tpu_custom_call.1} parent=0 // loop_exit
    _

</llo_original>
